<compile_context>
chip_gen: v7x
topology: tpu7x:2x2x1
jax: 0.10.0
libtpu: 0.0.40
codegen_flags: <defaults>
</compile_context>

<pallas_src>
import jax
import jax.numpy as jnp
from jax.experimental import pallas as pl
from jax.experimental.pallas import tpu as pltpu

# ------------------------- problem sizes -------------------------
B, C_IN, H, W = 2, 4, 16, 16
KH = KW = 3
C_OUT = 8
N_CLS = 10
HW = H * W
HP, WP = H + 2, W + 2            # zero-padded spatial dims
WCIN = W * C_IN                  # 64  -> K dim of each tap matmul
WCOUT = W * C_OUT                # 128 -> lane-dense conv intermediate width
N_PAD = 128                      # lane-dense padded logits width


# ------------------------- Pallas kernel -------------------------
def joint_kernel(x_ref, wblk_ref, b1_ref, pool_ref, whead_ref, b2_ref, out_ref):
    """Fused conv(3x3, pad=1) + bias + ReLU + global-avg-pool + linear head.

    x_ref    : [B*HP, WP*C_IN]        zero-padded NHWC input, flattened to 2-D
    wblk_ref : [KH*KW, WCIN, WCOUT]   per-tap block-diag weights kron(I_W, w_tap)
    b1_ref   : [1, WCOUT]             conv bias tiled over w (lane = w*C_OUT + o)
    pool_ref : [B, B*H]               block-of-ones selector (sums over h per batch)
    whead_ref: [WCOUT, N_PAD]         (1/HW) * w_fc tiled over w (folds w-pool + mean)
    b2_ref   : [1, N_PAD]             classifier bias, zero-padded to 128 lanes
    out_ref  : [B, N_PAD]             lane-dense logits (first N_CLS lanes valid)
    """
    x = x_ref[...]                                            # one load of the slab
    hs = []
    for b in range(B):
        acc = None
        t = 0
        for kh in range(KH):
            for kw in range(KW):
                r0 = b * HP + kh
                c0 = kw * C_IN
                patch = x[r0:r0 + H, c0:c0 + WCIN]            # [H, WCIN] static slice
                contrib = jnp.dot(patch, wblk_ref[t],
                                  preferred_element_type=jnp.float32)  # [H, WCOUT]
                acc = contrib if acc is None else acc + contrib
                t += 1
        hs.append(jnp.maximum(acc + b1_ref[...], 0.0))        # bias + ReLU, [H, 128]
    hcat = jnp.concatenate(hs, axis=0)                        # [B*H, 128]

    # Global average pool entirely on the MXU: sum over h via the pool selector,
    # sum over w and the 1/(H*W) factor are already folded into whead.
    pooled = jnp.dot(pool_ref[...], hcat,
                     preferred_element_type=jnp.float32)      # [B, 128]
    out_ref[...] = (jnp.dot(pooled, whead_ref[...],
                            preferred_element_type=jnp.float32)
                    + b2_ref[...])                            # [B, N_PAD]


# ------------------------- wrapper (all glue fused under one jit) -------------------------
@jax.jit
def joint_model_forward(x_nchw, w_conv, b_conv, w_fc, b_fc):
    """x_nchw: [B, C_IN, H, W] float32. Returns logits [B, N_CLS]."""
    # ---- input glue: NCHW -> padded NHWC -> 2-D slab [B*HP, WP*C_IN] ----
    x_nhwc = jnp.transpose(x_nchw, (0, 2, 3, 1)).astype(jnp.float32)
    x_pad = jnp.pad(x_nhwc, ((0, 0), (1, 1), (1, 1), (0, 0)))
    x2d = x_pad.reshape(B * HP, WP * C_IN)

    # ---- weight prep (tiny, weights only) ----
    # conv weight [C_OUT, C_IN, KH, KW] -> per-tap [C_IN, C_OUT] -> kron(I_W, tap)
    eye_w = jnp.eye(W, dtype=jnp.float32)
    taps = []
    for kh in range(KH):
        for kw in range(KW):
            wtap = w_conv[:, :, kh, kw].T.astype(jnp.float32)   # [C_IN, C_OUT]
            taps.append(jnp.kron(eye_w, wtap))                  # [WCIN, WCOUT]
    wblk = jnp.stack(taps, axis=0)                              # [9, 64, 128]

    b1 = jnp.tile(b_conv.astype(jnp.float32), W).reshape(1, WCOUT)

    # sum-over-h pooling selector: row b has ones in columns [b*H, (b+1)*H)
    pool = jnp.kron(jnp.eye(B, dtype=jnp.float32), jnp.ones((1, H), jnp.float32))

    # classifier weight: pad to 128 lanes, tile over w, fold in the 1/(H*W) mean
    w2_pad = jnp.zeros((C_OUT, N_PAD), jnp.float32).at[:, :N_CLS].set(
        w_fc.astype(jnp.float32))
    w_head = jnp.tile(w2_pad, (W, 1)) * (1.0 / HW)              # [128, 128]
    b2 = jnp.zeros((1, N_PAD), jnp.float32).at[0, :N_CLS].set(
        b_fc.astype(jnp.float32))

    flops = (2 * B * KH * KW * H * WCIN * WCOUT      # 18 tap matmuls
             + 2 * B * (B * H) * WCOUT               # pooling matmul
             + 2 * B * WCOUT * N_PAD)                # classifier head
    bytes_accessed = 4 * (x2d.size + wblk.size + b1.size + pool.size
                          + w_head.size + b2.size + B * N_PAD)

    out = pl.pallas_call(
        joint_kernel,
        out_shape=jax.ShapeDtypeStruct((B, N_PAD), jnp.float32),
        in_specs=[pl.BlockSpec(memory_space=pltpu.MemorySpace.VMEM)] * 6,
        out_specs=pl.BlockSpec(memory_space=pltpu.MemorySpace.VMEM),
        cost_estimate=pl.CostEstimate(flops=flops, transcendentals=0,
                                      bytes_accessed=bytes_accessed),
    )(x2d, wblk, b1, pool, w_head, b2)

    return out[:, :N_CLS]


# ------------------------- pure-JAX reference -------------------------
def joint_model_reference(x_nchw, w_conv, b_conv, w_fc, b_fc):
    x_nhwc = jnp.transpose(x_nchw, (0, 2, 3, 1))
    x_pad = jnp.pad(x_nhwc, ((0, 0), (1, 1), (1, 1), (0, 0)))
    acc = jnp.zeros((B, H, W, C_OUT), jnp.float32)
    for kh in range(KH):
        for kw in range(KW):
            patch = x_pad[:, kh:kh + H, kw:kw + W, :]            # [B,H,W,C_IN]
            wtap = w_conv[:, :, kh, kw]                          # [C_OUT, C_IN]
            acc = acc + jnp.einsum("bhwc,oc->bhwo", patch, wtap)
    acc = jnp.maximum(acc + b_conv.reshape(1, 1, 1, C_OUT), 0.0)
    feats = jnp.mean(acc, axis=(1, 2))                           # [B, C_OUT]
    return feats @ w_fc + b_fc.reshape(1, N_CLS)


# ------------------------- main -------------------------
if __name__ == "__main__":
    key = jax.random.PRNGKey(0)
    kx, kw1, kb1, kw2, kb2 = jax.random.split(key, 5)

    x = jax.random.normal(kx, (B, C_IN, H, W), dtype=jnp.float32)
    w_conv = jax.random.normal(kw1, (C_OUT, C_IN, KH, KW), dtype=jnp.float32) * 0.1
    b_conv = jax.random.normal(kb1, (C_OUT,), dtype=jnp.float32) * 0.1
    w_fc = jax.random.normal(kw2, (C_OUT, N_CLS), dtype=jnp.float32) * 0.1
    b_fc = jax.random.normal(kb2, (N_CLS,), dtype=jnp.float32) * 0.1

    logits = jax.block_until_ready(
        joint_model_forward(x, w_conv, b_conv, w_fc, b_fc))
    ref = jax.block_until_ready(
        joint_model_reference(x, w_conv, b_conv, w_fc, b_fc))

    assert logits.shape == (B, N_CLS)
    assert jnp.allclose(logits, ref, atol=1e-4, rtol=1e-4), (logits, ref)
    print("KERNEL_OK")
</pallas_src>

<mosaic_0001>
module attributes {stable_mosaic.version = 11 : i64} {
  func.func @joint_kernel(%arg0: memref<36x72xf32, #tpu.memory_space<vmem>>, %arg1: memref<9x64x128xf32, #tpu.memory_space<vmem>>, %arg2: memref<1x128xf32, #tpu.memory_space<vmem>>, %arg3: memref<2x32xf32, #tpu.memory_space<vmem>>, %arg4: memref<128x128xf32, #tpu.memory_space<vmem>>, %arg5: memref<1x128xf32, #tpu.memory_space<vmem>>, %arg6: memref<2x128xf32, #tpu.memory_space<vmem>>) attributes {dimension_semantics = [], scalar_prefetch = 0 : i64, scratch_operands = 0 : i64, tpu.core_type = #tpu.core_type<tc>} {
    %c0 = arith.constant 0 : index
    %c0_0 = arith.constant 0 : index
    %0 = vector.load %arg0[%c0, %c0_0] : memref<36x72xf32, #tpu.memory_space<vmem>>, vector<36x72xf32>
    %1 = vector.extract_strided_slice %0 {offsets = [0, 0], sizes = [16, 64], strides = [1, 1]} : vector<36x72xf32> to vector<16x64xf32>
    %c0_1 = arith.constant 0 : index
    %c0_2 = arith.constant 0 : index
    %c0_3 = arith.constant 0 : index
    %2 = vector.load %arg1[%c0_1, %c0_2, %c0_3] : memref<9x64x128xf32, #tpu.memory_space<vmem>>, vector<1x64x128xf32>
    %3 = vector.shape_cast %2 : vector<1x64x128xf32> to vector<64x128xf32>
    %cst = arith.constant dense<0.000000e+00> : vector<16x128xf32>
    %4 = tpu.matmul %1, %3, %cst {dimension_numbers = #tpu.dot_dimension_numbers<[1], [0], [0], [1], [0, 0, 1, 1], [], []>} : vector<16x64xf32>, vector<64x128xf32>, vector<16x128xf32> -> vector<16x128xf32>
    %5 = vector.extract_strided_slice %0 {offsets = [0, 4], sizes = [16, 64], strides = [1, 1]} : vector<36x72xf32> to vector<16x64xf32>
    %c1 = arith.constant 1 : index
    %c0_4 = arith.constant 0 : index
    %c0_5 = arith.constant 0 : index
    %6 = vector.load %arg1[%c1, %c0_4, %c0_5] : memref<9x64x128xf32, #tpu.memory_space<vmem>>, vector<1x64x128xf32>
    %7 = vector.shape_cast %6 : vector<1x64x128xf32> to vector<64x128xf32>
    %cst_6 = arith.constant dense<0.000000e+00> : vector<16x128xf32>
    %8 = tpu.matmul %5, %7, %cst_6 {dimension_numbers = #tpu.dot_dimension_numbers<[1], [0], [0], [1], [0, 0, 1, 1], [], []>} : vector<16x64xf32>, vector<64x128xf32>, vector<16x128xf32> -> vector<16x128xf32>
    %9 = arith.addf %4, %8 : vector<16x128xf32>
    %10 = vector.extract_strided_slice %0 {offsets = [0, 8], sizes = [16, 64], strides = [1, 1]} : vector<36x72xf32> to vector<16x64xf32>
    %c2 = arith.constant 2 : index
    %c0_7 = arith.constant 0 : index
    %c0_8 = arith.constant 0 : index
    %11 = vector.load %arg1[%c2, %c0_7, %c0_8] : memref<9x64x128xf32, #tpu.memory_space<vmem>>, vector<1x64x128xf32>
    %12 = vector.shape_cast %11 : vector<1x64x128xf32> to vector<64x128xf32>
    %cst_9 = arith.constant dense<0.000000e+00> : vector<16x128xf32>
    %13 = tpu.matmul %10, %12, %cst_9 {dimension_numbers = #tpu.dot_dimension_numbers<[1], [0], [0], [1], [0, 0, 1, 1], [], []>} : vector<16x64xf32>, vector<64x128xf32>, vector<16x128xf32> -> vector<16x128xf32>
    %14 = arith.addf %9, %13 : vector<16x128xf32>
    %15 = vector.extract_strided_slice %0 {offsets = [1, 0], sizes = [16, 64], strides = [1, 1]} : vector<36x72xf32> to vector<16x64xf32>
    %c3 = arith.constant 3 : index
    %c0_10 = arith.constant 0 : index
    %c0_11 = arith.constant 0 : index
    %16 = vector.load %arg1[%c3, %c0_10, %c0_11] : memref<9x64x128xf32, #tpu.memory_space<vmem>>, vector<1x64x128xf32>
    %17 = vector.shape_cast %16 : vector<1x64x128xf32> to vector<64x128xf32>
    %cst_12 = arith.constant dense<0.000000e+00> : vector<16x128xf32>
    %18 = tpu.matmul %15, %17, %cst_12 {dimension_numbers = #tpu.dot_dimension_numbers<[1], [0], [0], [1], [0, 0, 1, 1], [], []>} : vector<16x64xf32>, vector<64x128xf32>, vector<16x128xf32> -> vector<16x128xf32>
    %19 = arith.addf %14, %18 : vector<16x128xf32>
    %20 = vector.extract_strided_slice %0 {offsets = [1, 4], sizes = [16, 64], strides = [1, 1]} : vector<36x72xf32> to vector<16x64xf32>
    %c4 = arith.constant 4 : index
    %c0_13 = arith.constant 0 : index
    %c0_14 = arith.constant 0 : index
    %21 = vector.load %arg1[%c4, %c0_13, %c0_14] : memref<9x64x128xf32, #tpu.memory_space<vmem>>, vector<1x64x128xf32>
    %22 = vector.shape_cast %21 : vector<1x64x128xf32> to vector<64x128xf32>
    %cst_15 = arith.constant dense<0.000000e+00> : vector<16x128xf32>
    %23 = tpu.matmul %20, %22, %cst_15 {dimension_numbers = #tpu.dot_dimension_numbers<[1], [0], [0], [1], [0, 0, 1, 1], [], []>} : vector<16x64xf32>, vector<64x128xf32>, vector<16x128xf32> -> vector<16x128xf32>
    %24 = arith.addf %19, %23 : vector<16x128xf32>
    %25 = vector.extract_strided_slice %0 {offsets = [1, 8], sizes = [16, 64], strides = [1, 1]} : vector<36x72xf32> to vector<16x64xf32>
    %c5 = arith.constant 5 : index
    %c0_16 = arith.constant 0 : index
    %c0_17 = arith.constant 0 : index
    %26 = vector.load %arg1[%c5, %c0_16, %c0_17] : memref<9x64x128xf32, #tpu.memory_space<vmem>>, vector<1x64x128xf32>
    %27 = vector.shape_cast %26 : vector<1x64x128xf32> to vector<64x128xf32>
    %cst_18 = arith.constant dense<0.000000e+00> : vector<16x128xf32>
    %28 = tpu.matmul %25, %27, %cst_18 {dimension_numbers = #tpu.dot_dimension_numbers<[1], [0], [0], [1], [0, 0, 1, 1], [], []>} : vector<16x64xf32>, vector<64x128xf32>, vector<16x128xf32> -> vector<16x128xf32>
    %29 = arith.addf %24, %28 : vector<16x128xf32>
    %30 = vector.extract_strided_slice %0 {offsets = [2, 0], sizes = [16, 64], strides = [1, 1]} : vector<36x72xf32> to vector<16x64xf32>
    %c6 = arith.constant 6 : index
    %c0_19 = arith.constant 0 : index
    %c0_20 = arith.constant 0 : index
    %31 = vector.load %arg1[%c6, %c0_19, %c0_20] : memref<9x64x128xf32, #tpu.memory_space<vmem>>, vector<1x64x128xf32>
    %32 = vector.shape_cast %31 : vector<1x64x128xf32> to vector<64x128xf32>
    %cst_21 = arith.constant dense<0.000000e+00> : vector<16x128xf32>
    %33 = tpu.matmul %30, %32, %cst_21 {dimension_numbers = #tpu.dot_dimension_numbers<[1], [0], [0], [1], [0, 0, 1, 1], [], []>} : vector<16x64xf32>, vector<64x128xf32>, vector<16x128xf32> -> vector<16x128xf32>
    %34 = arith.addf %29, %33 : vector<16x128xf32>
    %35 = vector.extract_strided_slice %0 {offsets = [2, 4], sizes = [16, 64], strides = [1, 1]} : vector<36x72xf32> to vector<16x64xf32>
    %c7 = arith.constant 7 : index
    %c0_22 = arith.constant 0 : index
    %c0_23 = arith.constant 0 : index
    %36 = vector.load %arg1[%c7, %c0_22, %c0_23] : memref<9x64x128xf32, #tpu.memory_space<vmem>>, vector<1x64x128xf32>
    %37 = vector.shape_cast %36 : vector<1x64x128xf32> to vector<64x128xf32>
    %cst_24 = arith.constant dense<0.000000e+00> : vector<16x128xf32>
    %38 = tpu.matmul %35, %37, %cst_24 {dimension_numbers = #tpu.dot_dimension_numbers<[1], [0], [0], [1], [0, 0, 1, 1], [], []>} : vector<16x64xf32>, vector<64x128xf32>, vector<16x128xf32> -> vector<16x128xf32>
    %39 = arith.addf %34, %38 : vector<16x128xf32>
    %40 = vector.extract_strided_slice %0 {offsets = [2, 8], sizes = [16, 64], strides = [1, 1]} : vector<36x72xf32> to vector<16x64xf32>
    %c8 = arith.constant 8 : index
    %c0_25 = arith.constant 0 : index
    %c0_26 = arith.constant 0 : index
    %41 = vector.load %arg1[%c8, %c0_25, %c0_26] : memref<9x64x128xf32, #tpu.memory_space<vmem>>, vector<1x64x128xf32>
    %42 = vector.shape_cast %41 : vector<1x64x128xf32> to vector<64x128xf32>
    %cst_27 = arith.constant dense<0.000000e+00> : vector<16x128xf32>
    %43 = tpu.matmul %40, %42, %cst_27 {dimension_numbers = #tpu.dot_dimension_numbers<[1], [0], [0], [1], [0, 0, 1, 1], [], []>} : vector<16x64xf32>, vector<64x128xf32>, vector<16x128xf32> -> vector<16x128xf32>
    %44 = arith.addf %39, %43 : vector<16x128xf32>
    %c0_28 = arith.constant 0 : index
    %c0_29 = arith.constant 0 : index
    %45 = vector.load %arg2[%c0_28, %c0_29] : memref<1x128xf32, #tpu.memory_space<vmem>>, vector<1x128xf32>
    %46 = vector.broadcast %45 : vector<1x128xf32> to vector<16x128xf32>
    %47 = arith.addf %44, %46 : vector<16x128xf32>
    %cst_30 = arith.constant 0.000000e+00 : f32
    %48 = vector.broadcast %cst_30 : f32 to vector<16x128xf32>
    %49 = arith.maximumf %47, %48 : vector<16x128xf32>
    %50 = vector.extract_strided_slice %0 {offsets = [18, 0], sizes = [16, 64], strides = [1, 1]} : vector<36x72xf32> to vector<16x64xf32>
    %c0_31 = arith.constant 0 : index
    %c0_32 = arith.constant 0 : index
    %c0_33 = arith.constant 0 : index
    %51 = vector.load %arg1[%c0_31, %c0_32, %c0_33] : memref<9x64x128xf32, #tpu.memory_space<vmem>>, vector<1x64x128xf32>
    %52 = vector.shape_cast %51 : vector<1x64x128xf32> to vector<64x128xf32>
    %cst_34 = arith.constant dense<0.000000e+00> : vector<16x128xf32>
    %53 = tpu.matmul %50, %52, %cst_34 {dimension_numbers = #tpu.dot_dimension_numbers<[1], [0], [0], [1], [0, 0, 1, 1], [], []>} : vector<16x64xf32>, vector<64x128xf32>, vector<16x128xf32> -> vector<16x128xf32>
    %54 = vector.extract_strided_slice %0 {offsets = [18, 4], sizes = [16, 64], strides = [1, 1]} : vector<36x72xf32> to vector<16x64xf32>
    %c1_35 = arith.constant 1 : index
    %c0_36 = arith.constant 0 : index
    %c0_37 = arith.constant 0 : index
    %55 = vector.load %arg1[%c1_35, %c0_36, %c0_37] : memref<9x64x128xf32, #tpu.memory_space<vmem>>, vector<1x64x128xf32>
    %56 = vector.shape_cast %55 : vector<1x64x128xf32> to vector<64x128xf32>
    %cst_38 = arith.constant dense<0.000000e+00> : vector<16x128xf32>
    %57 = tpu.matmul %54, %56, %cst_38 {dimension_numbers = #tpu.dot_dimension_numbers<[1], [0], [0], [1], [0, 0, 1, 1], [], []>} : vector<16x64xf32>, vector<64x128xf32>, vector<16x128xf32> -> vector<16x128xf32>
    %58 = arith.addf %53, %57 : vector<16x128xf32>
    %59 = vector.extract_strided_slice %0 {offsets = [18, 8], sizes = [16, 64], strides = [1, 1]} : vector<36x72xf32> to vector<16x64xf32>
    %c2_39 = arith.constant 2 : index
    %c0_40 = arith.constant 0 : index
    %c0_41 = arith.constant 0 : index
    %60 = vector.load %arg1[%c2_39, %c0_40, %c0_41] : memref<9x64x128xf32, #tpu.memory_space<vmem>>, vector<1x64x128xf32>
    %61 = vector.shape_cast %60 : vector<1x64x128xf32> to vector<64x128xf32>
    %cst_42 = arith.constant dense<0.000000e+00> : vector<16x128xf32>
    %62 = tpu.matmul %59, %61, %cst_42 {dimension_numbers = #tpu.dot_dimension_numbers<[1], [0], [0], [1], [0, 0, 1, 1], [], []>} : vector<16x64xf32>, vector<64x128xf32>, vector<16x128xf32> -> vector<16x128xf32>
    %63 = arith.addf %58, %62 : vector<16x128xf32>
    %64 = vector.extract_strided_slice %0 {offsets = [19, 0], sizes = [16, 64], strides = [1, 1]} : vector<36x72xf32> to vector<16x64xf32>
    %c3_43 = arith.constant 3 : index
    %c0_44 = arith.constant 0 : index
    %c0_45 = arith.constant 0 : index
    %65 = vector.load %arg1[%c3_43, %c0_44, %c0_45] : memref<9x64x128xf32, #tpu.memory_space<vmem>>, vector<1x64x128xf32>
    %66 = vector.shape_cast %65 : vector<1x64x128xf32> to vector<64x128xf32>
    %cst_46 = arith.constant dense<0.000000e+00> : vector<16x128xf32>
    %67 = tpu.matmul %64, %66, %cst_46 {dimension_numbers = #tpu.dot_dimension_numbers<[1], [0], [0], [1], [0, 0, 1, 1], [], []>} : vector<16x64xf32>, vector<64x128xf32>, vector<16x128xf32> -> vector<16x128xf32>
    %68 = arith.addf %63, %67 : vector<16x128xf32>
    %69 = vector.extract_strided_slice %0 {offsets = [19, 4], sizes = [16, 64], strides = [1, 1]} : vector<36x72xf32> to vector<16x64xf32>
    %c4_47 = arith.constant 4 : index
    %c0_48 = arith.constant 0 : index
    %c0_49 = arith.constant 0 : index
    %70 = vector.load %arg1[%c4_47, %c0_48, %c0_49] : memref<9x64x128xf32, #tpu.memory_space<vmem>>, vector<1x64x128xf32>
    %71 = vector.shape_cast %70 : vector<1x64x128xf32> to vector<64x128xf32>
    %cst_50 = arith.constant dense<0.000000e+00> : vector<16x128xf32>
    %72 = tpu.matmul %69, %71, %cst_50 {dimension_numbers = #tpu.dot_dimension_numbers<[1], [0], [0], [1], [0, 0, 1, 1], [], []>} : vector<16x64xf32>, vector<64x128xf32>, vector<16x128xf32> -> vector<16x128xf32>
    %73 = arith.addf %68, %72 : vector<16x128xf32>
    %74 = vector.extract_strided_slice %0 {offsets = [19, 8], sizes = [16, 64], strides = [1, 1]} : vector<36x72xf32> to vector<16x64xf32>
    %c5_51 = arith.constant 5 : index
    %c0_52 = arith.constant 0 : index
    %c0_53 = arith.constant 0 : index
    %75 = vector.load %arg1[%c5_51, %c0_52, %c0_53] : memref<9x64x128xf32, #tpu.memory_space<vmem>>, vector<1x64x128xf32>
    %76 = vector.shape_cast %75 : vector<1x64x128xf32> to vector<64x128xf32>
    %cst_54 = arith.constant dense<0.000000e+00> : vector<16x128xf32>
    %77 = tpu.matmul %74, %76, %cst_54 {dimension_numbers = #tpu.dot_dimension_numbers<[1], [0], [0], [1], [0, 0, 1, 1], [], []>} : vector<16x64xf32>, vector<64x128xf32>, vector<16x128xf32> -> vector<16x128xf32>
    %78 = arith.addf %73, %77 : vector<16x128xf32>
    %79 = vector.extract_strided_slice %0 {offsets = [20, 0], sizes = [16, 64], strides = [1, 1]} : vector<36x72xf32> to vector<16x64xf32>
    %c6_55 = arith.constant 6 : index
    %c0_56 = arith.constant 0 : index
    %c0_57 = arith.constant 0 : index
    %80 = vector.load %arg1[%c6_55, %c0_56, %c0_57] : memref<9x64x128xf32, #tpu.memory_space<vmem>>, vector<1x64x128xf32>
    %81 = vector.shape_cast %80 : vector<1x64x128xf32> to vector<64x128xf32>
    %cst_58 = arith.constant dense<0.000000e+00> : vector<16x128xf32>
    %82 = tpu.matmul %79, %81, %cst_58 {dimension_numbers = #tpu.dot_dimension_numbers<[1], [0], [0], [1], [0, 0, 1, 1], [], []>} : vector<16x64xf32>, vector<64x128xf32>, vector<16x128xf32> -> vector<16x128xf32>
    %83 = arith.addf %78, %82 : vector<16x128xf32>
    %84 = vector.extract_strided_slice %0 {offsets = [20, 4], sizes = [16, 64], strides = [1, 1]} : vector<36x72xf32> to vector<16x64xf32>
    %c7_59 = arith.constant 7 : index
    %c0_60 = arith.constant 0 : index
    %c0_61 = arith.constant 0 : index
    %85 = vector.load %arg1[%c7_59, %c0_60, %c0_61] : memref<9x64x128xf32, #tpu.memory_space<vmem>>, vector<1x64x128xf32>
    %86 = vector.shape_cast %85 : vector<1x64x128xf32> to vector<64x128xf32>
    %cst_62 = arith.constant dense<0.000000e+00> : vector<16x128xf32>
    %87 = tpu.matmul %84, %86, %cst_62 {dimension_numbers = #tpu.dot_dimension_numbers<[1], [0], [0], [1], [0, 0, 1, 1], [], []>} : vector<16x64xf32>, vector<64x128xf32>, vector<16x128xf32> -> vector<16x128xf32>
    %88 = arith.addf %83, %87 : vector<16x128xf32>
    %89 = vector.extract_strided_slice %0 {offsets = [20, 8], sizes = [16, 64], strides = [1, 1]} : vector<36x72xf32> to vector<16x64xf32>
    %c8_63 = arith.constant 8 : index
    %c0_64 = arith.constant 0 : index
    %c0_65 = arith.constant 0 : index
    %90 = vector.load %arg1[%c8_63, %c0_64, %c0_65] : memref<9x64x128xf32, #tpu.memory_space<vmem>>, vector<1x64x128xf32>
    %91 = vector.shape_cast %90 : vector<1x64x128xf32> to vector<64x128xf32>
    %cst_66 = arith.constant dense<0.000000e+00> : vector<16x128xf32>
    %92 = tpu.matmul %89, %91, %cst_66 {dimension_numbers = #tpu.dot_dimension_numbers<[1], [0], [0], [1], [0, 0, 1, 1], [], []>} : vector<16x64xf32>, vector<64x128xf32>, vector<16x128xf32> -> vector<16x128xf32>
    %93 = arith.addf %88, %92 : vector<16x128xf32>
    %c0_67 = arith.constant 0 : index
    %c0_68 = arith.constant 0 : index
    %94 = vector.load %arg2[%c0_67, %c0_68] : memref<1x128xf32, #tpu.memory_space<vmem>>, vector<1x128xf32>
    %95 = vector.broadcast %94 : vector<1x128xf32> to vector<16x128xf32>
    %96 = arith.addf %93, %95 : vector<16x128xf32>
    %cst_69 = arith.constant 0.000000e+00 : f32
    %97 = vector.broadcast %cst_69 : f32 to vector<16x128xf32>
    %98 = arith.maximumf %96, %97 : vector<16x128xf32>
    %99 = tpu.concatenate %49, %98 in 0 : vector<16x128xf32>, vector<16x128xf32> -> vector<32x128xf32>
    %c0_70 = arith.constant 0 : index
    %c0_71 = arith.constant 0 : index
    %100 = vector.load %arg3[%c0_70, %c0_71] : memref<2x32xf32, #tpu.memory_space<vmem>>, vector<2x32xf32>
    %cst_72 = arith.constant dense<0.000000e+00> : vector<2x128xf32>
    %101 = tpu.matmul %100, %99, %cst_72 {dimension_numbers = #tpu.dot_dimension_numbers<[1], [0], [0], [1], [0, 0, 1, 1], [], []>} : vector<2x32xf32>, vector<32x128xf32>, vector<2x128xf32> -> vector<2x128xf32>
    %c0_73 = arith.constant 0 : index
    %c0_74 = arith.constant 0 : index
    %102 = vector.load %arg4[%c0_73, %c0_74] : memref<128x128xf32, #tpu.memory_space<vmem>>, vector<128x128xf32>
    %cst_75 = arith.constant dense<0.000000e+00> : vector<2x128xf32>
    %103 = tpu.matmul %101, %102, %cst_75 {dimension_numbers = #tpu.dot_dimension_numbers<[1], [0], [0], [1], [0, 0, 1, 1], [], []>} : vector<2x128xf32>, vector<128x128xf32>, vector<2x128xf32> -> vector<2x128xf32>
    %c0_76 = arith.constant 0 : index
    %c0_77 = arith.constant 0 : index
    %104 = vector.load %arg5[%c0_76, %c0_77] : memref<1x128xf32, #tpu.memory_space<vmem>>, vector<1x128xf32>
    %105 = vector.broadcast %104 : vector<1x128xf32> to vector<2x128xf32>
    %106 = arith.addf %103, %105 : vector<2x128xf32>
    %c0_78 = arith.constant 0 : index
    %c0_79 = arith.constant 0 : index
    %107 = vector.load %arg6[%c0_78, %c0_79] : memref<2x128xf32, #tpu.memory_space<vmem>>, vector<2x128xf32>
    tpu.vector_store %arg6[%c0_78, %c0_79], %106 {strides = array<i32>} : memref<2x128xf32, #tpu.memory_space<vmem>>, vector<2x128xf32>,
    return
  }
}

</mosaic_0001>

<llo_original>
// kernel: tile.13
$region0: #{tile.13}
  #allocation0 [shape = 's32[1]{0}', space=sflag, size = 0x4, scoped, tag = 'scoped memory for tile.13']
  %s0 = inlined_call_operand.vmem [shape: f32[8], index: 0, kind: input, shape index: {}]
  %s1 = inlined_call_operand.vmem [shape: f32[16,8], index: 1, kind: output, shape index: {}]
  // Predicated region
  $region2: #{tile.13} parent=0 // pred_check
    _
  $region3: #{tile.13} parent=0 // pred_check_branch
    %3 = sbr.rel (0) target = $region5
  $region4: #{tile.13} parent=0 // pred_region
    _
  $region5: #{tile.13} parent=0 // pred_fallthru
    _
  %v4 = vld [vmem:[%s0] ss:$0 sm:$0xff]
  %5 = vst [vmem:[%s1] sm:$0xff] %v4
  %s6 = scalar_lea.vmem %s1, 8
  %7 = vst [vmem:[%s6] sm:$0xff] %v4

// kernel: tile.14
$region0: #{tile.14}
  %s0 = inlined_call_operand.vmem [shape: f32[16,8], index: 0, kind: input, shape index: {}]
  %s1 = inlined_call_operand.vmem [shape: f32[1,128], index: 1, kind: output, shape index: {}]
  $region1: #{tile.14} parent=0
    #allocation0 [shape = 'u8[4096]{0}', space=vmem, size = 0x1000, scoped, tag = 'scoped mem for output reshape']
    %v2 = vld [vmem:[%s0] sm:$0x1]
    %vm3 = vcmask 64512
    %4 = vst.msk [vmem:[#allocation0] sm:$0x1] %vm3, %v2
    %s5 = scalar_lea.vmem %s0, 15
    %v6 = vld [vmem:[%s5] sm:$0x1]
    %7 = vrot.lane.b32.xlu0 %v6, 120
    %v8 = vpop.permute.xlu0 %7
    %vm9 = vcmask 1048512
    %10 = vst.msk [vmem:[#allocation0] sm:$0x1] %vm9, %v8
    %s11 = scalar_lea.vmem %s0, 14
    %v12 = vld [vmem:[%s11] sm:$0x1]
    %13 = vrot.lane.b32.xlu0 %v12, 112
    %v14 = vpop.permute.xlu0 %13
    %vm15 = vcmask 982912
    %16 = vst.msk [vmem:[#allocation0] sm:$0x1] %vm15, %v14
    %s17 = scalar_lea.vmem %s0, 13
    %v18 = vld [vmem:[%s17] sm:$0x1]
    %19 = vrot.lane.b32.xlu0 %v18, 104
    %v20 = vpop.permute.xlu0 %19
    %vm21 = vcmask 917312
    %22 = vst.msk [vmem:[#allocation0] sm:$0x1] %vm21, %v20
    %s23 = scalar_lea.vmem %s0, 12
    %v24 = vld [vmem:[%s23] sm:$0x1]
    %25 = vrot.lane.b32.xlu0 %v24, 96
    %v26 = vpop.permute.xlu0 %25
    %vm27 = vcmask 851712
    %28 = vst.msk [vmem:[#allocation0] sm:$0x1] %vm27, %v26
    %s29 = scalar_lea.vmem %s0, 11
    %v30 = vld [vmem:[%s29] sm:$0x1]
    %31 = vrot.lane.b32.xlu0 %v30, 88
    %v32 = vpop.permute.xlu0 %31
    %vm33 = vcmask 786112
    %34 = vst.msk [vmem:[#allocation0] sm:$0x1] %vm33, %v32
    %s35 = scalar_lea.vmem %s0, 10
    %v36 = vld [vmem:[%s35] sm:$0x1]
    %37 = vrot.lane.b32.xlu0 %v36, 80
    %v38 = vpop.permute.xlu0 %37
    %vm39 = vcmask 720512
    %40 = vst.msk [vmem:[#allocation0] sm:$0x1] %vm39, %v38
    %s41 = scalar_lea.vmem %s0, 9
    %v42 = vld [vmem:[%s41] sm:$0x1]
    %43 = vrot.lane.b32.xlu0 %v42, 72
    %v44 = vpop.permute.xlu0 %43
    %vm45 = vcmask 654912
    %46 = vst.msk [vmem:[#allocation0] sm:$0x1] %vm45, %v44
    %s47 = scalar_lea.vmem %s0, 8
    %v48 = vld [vmem:[%s47] sm:$0x1]
    %49 = vrot.lane.b32.xlu0 %v48, 64
    %v50 = vpop.permute.xlu0 %49
    %vm51 = vcmask 589312
    %52 = vst.msk [vmem:[#allocation0] sm:$0x1] %vm51, %v50
    %s53 = scalar_lea.vmem %s0, 7
    %v54 = vld [vmem:[%s53] sm:$0x1]
    %55 = vrot.lane.b32.xlu0 %v54, 56
    %v56 = vpop.permute.xlu0 %55
    %vm57 = vcmask 523712
    %58 = vst.msk [vmem:[#allocation0] sm:$0x1] %vm57, %v56
    %s59 = scalar_lea.vmem %s0, 6
    %v60 = vld [vmem:[%s59] sm:$0x1]
    %61 = vrot.lane.b32.xlu0 %v60, 48
    %v62 = vpop.permute.xlu0 %61
    %vm63 = vcmask 458112
    %64 = vst.msk [vmem:[#allocation0] sm:$0x1] %vm63, %v62
    %s65 = scalar_lea.vmem %s0, 5
    %v66 = vld [vmem:[%s65] sm:$0x1]
    %67 = vrot.lane.b32.xlu0 %v66, 40
    %v68 = vpop.permute.xlu0 %67
    %vm69 = vcmask 392512
    %70 = vst.msk [vmem:[#allocation0] sm:$0x1] %vm69, %v68
    %s71 = scalar_lea.vmem %s0, 4
    %v72 = vld [vmem:[%s71] sm:$0x1]
    %73 = vrot.lane.b32.xlu0 %v72, 32
    %v74 = vpop.permute.xlu0 %73
    %vm75 = vcmask 326912
    %76 = vst.msk [vmem:[#allocation0] sm:$0x1] %vm75, %v74
    %s77 = scalar_lea.vmem %s0, 3
    %v78 = vld [vmem:[%s77] sm:$0x1]
    %79 = vrot.lane.b32.xlu0 %v78, 24
    %v80 = vpop.permute.xlu0 %79
    %vm81 = vcmask 261312
    %82 = vst.msk [vmem:[#allocation0] sm:$0x1] %vm81, %v80
    %s83 = scalar_lea.vmem %s0, 2
    %v84 = vld [vmem:[%s83] sm:$0x1]
    %85 = vrot.lane.b32.xlu0 %v84, 16
    %v86 = vpop.permute.xlu0 %85
    %vm87 = vcmask 195712
    %88 = vst.msk [vmem:[#allocation0] sm:$0x1] %vm87, %v86
    %s89 = scalar_lea.vmem %s0, 1
    %v90 = vld [vmem:[%s89] sm:$0x1]
    %91 = vrot.lane.b32.xlu0 %v90, 8
    %v92 = vpop.permute.xlu0 %91
    %vm93 = vcmask 130112
    %94 = vst.msk [vmem:[#allocation0] sm:$0x1] %vm93, %v92
    %s96 = sshllo.u32 0, 1
    %v98 = vld [vmem:[#allocation0] sm:%s96]
    %s99 = sshllo.u32 0, 1
    %100 = vst [vmem:[%s1] sm:%s99] %v98

// kernel: joint_model_forward.1
$region0: #{joint_model_forward.1}
  #allocation0 [shape = 'u32[]', space=smem, size = 0x4, offset = 0x4, fixed_abs, tag = 'smem constant byte address 0x4 - core index']
  #allocation1 [shape = 'u32[144,128]{1,0:T(1,128)}', space=vmem, size = 0x12000, scoped, tag = 'internal scratch']
  %s0 = inlined_call_operand.vmem [shape: f32[36,72], index: 0, kind: input, shape index: {}]
  %s1 = inlined_call_operand.vmem [shape: f32[9,64,128], index: 1, kind: input, shape index: {}]
  %s2 = inlined_call_operand.vmem [shape: f32[1,128], index: 2, kind: input, shape index: {}]
  %s3 = inlined_call_operand.vmem [shape: f32[2,32], index: 3, kind: input, shape index: {}]
  %s4 = inlined_call_operand.vmem [shape: f32[128,128], index: 4, kind: input, shape index: {}]
  %s5 = inlined_call_operand.vmem [shape: f32[1,128], index: 5, kind: input, shape index: {}]
  %s6 = inlined_call_operand.hbm [shape: f32[2,128], index: 6, kind: output, shape index: {}]
  %s7 = sld [smem:[#allocation0]]
  $region34: #{joint_model_forward.1} parent=0
    _
  %s9 = ssub.s32 1, %s7
  %s10 = scalar_select 0, %s9, %s7
  $region1: #{joint_model_forward.1} parent=0
    #allocation2 [shape = 'u8[1024]{0}', space=vmem, size = 0x400, scoped, tag = 'output window, operand 0, single buffered']
    #allocation3 [shape = 's32[1]{0}', space=sflag, size = 0x4, scoped, tag = 'scoped memory for joint_model_forward.1']
    %11 = vsyncpa [#allocation3], 0
    // Predicated region
    $region2: #{joint_model_forward.1} parent=1 // pred_check
      _
    $region3: #{joint_model_forward.1} parent=1 // pred_check_branch
      %13 = sbr.rel (0) target = $region5
    $region4: #{joint_model_forward.1} parent=1 // pred_region
      _
    $region5: #{joint_model_forward.1} parent=1 // pred_fallthru
      _
    // Predicated region
    $region6: #{joint_model_forward.1} parent=1 // pred_check
      _
    $region7: #{joint_model_forward.1} parent=1 // pred_check_branch
      %15 = sbr.rel (0) target = $region9
    $region8: #{joint_model_forward.1} parent=1 // pred_region
      _
    $region9: #{joint_model_forward.1} parent=1 // pred_fallthru
      _
    // Predicated region
    $region10: #{joint_model_forward.1} parent=1 // pred_check
      _
    $region11: #{joint_model_forward.1} parent=1 // pred_check_branch
      %17 = sbr.rel (0) target = $region13
    $region12: #{joint_model_forward.1} parent=1 // pred_region
      _
    $region13: #{joint_model_forward.1} parent=1 // pred_fallthru
      _
    // Predicated region
    $region14: #{joint_model_forward.1} parent=1 // pred_check
      _
    $region15: #{joint_model_forward.1} parent=1 // pred_check_branch
      %19 = sbr.rel (0) target = $region17
    $region16: #{joint_model_forward.1} parent=1 // pred_region
      _
    $region17: #{joint_model_forward.1} parent=1 // pred_fallthru
      _
    // Predicated region
    $region18: #{joint_model_forward.1} parent=1 // pred_check
      _
    $region19: #{joint_model_forward.1} parent=1 // pred_check_branch
      %21 = sbr.rel (0) target = $region21
    $region20: #{joint_model_forward.1} parent=1 // pred_region
      _
    $region21: #{joint_model_forward.1} parent=1 // pred_fallthru
      _
    // Predicated region
    $region22: #{joint_model_forward.1} parent=1 // pred_check
      _
    $region23: #{joint_model_forward.1} parent=1 // pred_check_branch
      %23 = sbr.rel (0) target = $region25
    $region24: #{joint_model_forward.1} parent=1 // pred_region
      _
    $region25: #{joint_model_forward.1} parent=1 // pred_fallthru
      _
    %v24 = vld [vmem:[%s0] sm:$0xff]
    %v25 = vld [vmem:[%s0 + $0x8] sm:$0xff]
    %v26 = vld [vmem:[%s0 + $0x10] sm:$0xff]
    %v27 = vld [vmem:[%s0 + $0x18] sm:$0xff]
    %v28 = vld [vmem:[%s0 + $0x20] sm:$0xf]
    %v29 = vld [vmem:[%s1] sm:$0xff]
    %v30 = vld [vmem:[%s1 + $0x8] sm:$0xff]
    %v31 = vld [vmem:[%s1 + $0x10] sm:$0xff]
    %v32 = vld [vmem:[%s1 + $0x18] sm:$0xff]
    %v33 = vld [vmem:[%s1 + $0x20] sm:$0xff]
    %v34 = vld [vmem:[%s1 + $0x28] sm:$0xff]
    %v35 = vld [vmem:[%s1 + $0x30] sm:$0xff]
    %v36 = vld [vmem:[%s1 + $0x38] sm:$0xff]
    %s37 = scalar_lea.vmem %s1, 64
    %v38 = vld [vmem:[%s37] sm:$0xff]
    %v39 = vld [vmem:[%s37 + $0x8] sm:$0xff]
    %v40 = vld [vmem:[%s37 + $0x10] sm:$0xff]
    %v41 = vld [vmem:[%s37 + $0x18] sm:$0xff]
    %v42 = vld [vmem:[%s37 + $0x20] sm:$0xff]
    %v43 = vld [vmem:[%s37 + $0x28] sm:$0xff]
    %v44 = vld [vmem:[%s37 + $0x30] sm:$0xff]
    %v45 = vld [vmem:[%s37 + $0x38] sm:$0xff]
    %48 = vrot.lane.b32.xlu0 %v24, 124
    %v49 = vpop.permute.xlu0 %48
    %50 = vrot.lane.b32.xlu0 %v25, 124
    %v51 = vpop.permute.xlu0 %50
    %vm52 = vcmask 523264
    %v53 = vsel %vm52, %v49, 0
    %v55 = vsel %vm52, %v51, 0
    %57 = vmatprep.subr.mxu0 0.0
    %58 = vmatpush1.msra.mxu0 %v38
    %59 = vmatprep.subr.mxu0 0.0
    %60 = vmatpush1.msra.mxu0 %v39
    %61 = vmatprep.subr.mxu0 0.0
    %62 = vmatpush1.msra.mxu0 %v40
    %63 = vmatprep.subr.mxu0 0.0
    %64 = vmatpush1.msra.mxu0 %v41
    %65 = vmatprep.subr.mxu0 0.0
    %66 = vmatpush1.msra.mxu0 %v42
    %67 = vmatprep.subr.mxu0 0.0
    %68 = vmatpush1.msra.mxu0 %v43
    %69 = vmatprep.subr.mxu0 0.0
    %70 = vmatpush1.msra.mxu0 %v44
    %71 = vmatprep.subr.mxu0 0.0
    %72 = vmatpush1.msra.mxu0 %v45
    %73 = vmatprep.subr.mxu0 0.0
    %74 = vmatpush1.msra.mxu0 0.0
    %75 = vmatprep.subr.mxu0 0.0
    %76 = vmatpush1.msra.mxu0 0.0
    %77 = vmatprep.subr.mxu0 0.0
    %78 = vmatpush1.msra.mxu0 0.0
    %79 = vmatprep.subr.mxu0 0.0
    %80 = vmatpush1.msra.mxu0 0.0
    %81 = vmatprep.subr.mxu0 0.0
    %82 = vmatpush1.msra.mxu0 0.0
    %83 = vmatprep.subr.mxu0 0.0
    %84 = vmatpush1.msra.mxu0 0.0
    %85 = vmatprep.subr.mxu0 0.0
    %86 = vmatpush1.msra.mxu0 0.0
    %87 = vmatprep.subr.mxu0 0.0
    %88 = vmatpush1.msra.mxu0 0.0
    %89 = vmatprep.subr.mxu0 0.0
    %90 = vmatpush1.msra.mxu0 0.0
    %91 = vmatprep.subr.mxu0 0.0
    %92 = vmatpush1.msra.mxu0 0.0
    %93 = vmatprep.subr.mxu0 0.0
    %94 = vmatpush1.msra.mxu0 0.0
    %95 = vmatprep.subr.mxu0 0.0
    %96 = vmatpush1.msra.mxu0 0.0
    %97 = vmatprep.subr.mxu0 0.0
    %98 = vmatpush1.msra.mxu0 0.0
    %99 = vmatprep.subr.mxu0 0.0
    %100 = vmatpush1.msra.mxu0 0.0
    %101 = vmatprep.subr.mxu0 0.0
    %102 = vmatpush1.msra.mxu0 0.0
    %103 = vmatprep.subr.mxu0 0.0
    %104 = vmatpush1.msra.mxu0 0.0
    %105 = vmatprep.subr.mxu0 0.0
    %106 = vmatpush1.msra.mxu0 0.0
    %107 = vmatprep.subr.mxu0 0.0
    %108 = vmatpush1.msra.mxu0 0.0
    %109 = vmatprep.subr.mxu0 0.0
    %110 = vmatpush1.msra.mxu0 0.0
    %111 = vmatprep.subr.mxu0 0.0
    %112 = vmatpush1.msra.mxu0 0.0
    %113 = vmatprep.subr.mxu0 0.0
    %114 = vmatpush1.msra.mxu0 0.0
    %115 = vmatprep.subr.mxu0 0.0
    %116 = vmatpush1.msra.mxu0 0.0
    %117 = vmatprep.subr.mxu0 0.0
    %118 = vmatpush1.msra.mxu0 0.0
    %119 = vmatprep.subr.mxu0 0.0
    %120 = vmatpush1.msra.mxu0 0.0
    %121 = vmatprep.mubr.f32.mxu0 0.0
    %122 = vmatmul.mubr.f32.gmra.mrb[0].mxu0 %v53
    %v123 = vpop.f32.mrb[0].mxu0
    %v124 = vadd.f32 0.0, %v123
    %v125 = vpop.f32.mrb[0].mxu0
    %126 = vmatprep.mubr.f32.mxu0 0.0
    %127 = vmatmul.mubr.f32.gmra.mrb[0].mxu0 %v55
    %v128 = vpop.f32.mrb[0].mxu0
    %v129 = vadd.f32 0.0, %v128
    %v130 = vpop.f32.mrb[0].mxu0
    %131 = vdwg.mxu0
    %v132 = vsel %vm52, %v24, 0
    %v134 = vsel %vm52, %v25, 0
    %136 = vmatprep.subr.mxu0 0.0
    %137 = vmatpush1.msra.mxu0 %v29
    %138 = vmatprep.subr.mxu0 0.0
    %139 = vmatpush1.msra.mxu0 %v30
    %140 = vmatprep.subr.mxu0 0.0
    %141 = vmatpush1.msra.mxu0 %v31
    %142 = vmatprep.subr.mxu0 0.0
    %143 = vmatpush1.msra.mxu0 %v32
    %144 = vmatprep.subr.mxu0 0.0
    %145 = vmatpush1.msra.mxu0 %v33
    %146 = vmatprep.subr.mxu0 0.0
    %147 = vmatpush1.msra.mxu0 %v34
    %148 = vmatprep.subr.mxu0 0.0
    %149 = vmatpush1.msra.mxu0 %v35
    %150 = vmatprep.subr.mxu0 0.0
    %151 = vmatpush1.msra.mxu0 %v36
    %152 = vmatprep.subr.mxu0 0.0
    %153 = vmatpush1.msra.mxu0 0.0
    %154 = vmatprep.subr.mxu0 0.0
    %155 = vmatpush1.msra.mxu0 0.0
    %156 = vmatprep.subr.mxu0 0.0
    %157 = vmatpush1.msra.mxu0 0.0
    %158 = vmatprep.subr.mxu0 0.0
    %159 = vmatpush1.msra.mxu0 0.0
    %160 = vmatprep.subr.mxu0 0.0
    %161 = vmatpush1.msra.mxu0 0.0
    %162 = vmatprep.subr.mxu0 0.0
    %163 = vmatpush1.msra.mxu0 0.0
    %164 = vmatprep.subr.mxu0 0.0
    %165 = vmatpush1.msra.mxu0 0.0
    %166 = vmatprep.subr.mxu0 0.0
    %167 = vmatpush1.msra.mxu0 0.0
    %168 = vmatprep.subr.mxu0 0.0
    %169 = vmatpush1.msra.mxu0 0.0
    %170 = vmatprep.subr.mxu0 0.0
    %171 = vmatpush1.msra.mxu0 0.0
    %172 = vmatprep.subr.mxu0 0.0
    %173 = vmatpush1.msra.mxu0 0.0
    %174 = vmatprep.subr.mxu0 0.0
    %175 = vmatpush1.msra.mxu0 0.0
    %176 = vmatprep.subr.mxu0 0.0
    %177 = vmatpush1.msra.mxu0 0.0
    %178 = vmatprep.subr.mxu0 0.0
    %179 = vmatpush1.msra.mxu0 0.0
    %180 = vmatprep.subr.mxu0 0.0
    %181 = vmatpush1.msra.mxu0 0.0
    %182 = vmatprep.subr.mxu0 0.0
    %183 = vmatpush1.msra.mxu0 0.0
    %184 = vmatprep.subr.mxu0 0.0
    %185 = vmatpush1.msra.mxu0 0.0
    %186 = vmatprep.subr.mxu0 0.0
    %187 = vmatpush1.msra.mxu0 0.0
    %188 = vmatprep.subr.mxu0 0.0
    %189 = vmatpush1.msra.mxu0 0.0
    %190 = vmatprep.subr.mxu0 0.0
    %191 = vmatpush1.msra.mxu0 0.0
    %192 = vmatprep.subr.mxu0 0.0
    %193 = vmatpush1.msra.mxu0 0.0
    %194 = vmatprep.subr.mxu0 0.0
    %195 = vmatpush1.msra.mxu0 0.0
    %196 = vmatprep.subr.mxu0 0.0
    %197 = vmatpush1.msra.mxu0 0.0
    %198 = vmatprep.subr.mxu0 0.0
    %199 = vmatpush1.msra.mxu0 0.0
    %200 = vmatprep.mubr.f32.mxu0 0.0
    %201 = vmatmul.mubr.f32.gmra.mrb[0].mxu0 %v132
    %v202 = vpop.f32.mrb[0].mxu0
    %v203 = vadd.f32 %v124, %v202
    %v204 = vpop.f32.mrb[0].mxu0
    %205 = vmatprep.mubr.f32.mxu0 0.0
    %206 = vmatmul.mubr.f32.gmra.mrb[0].mxu0 %v134
    %v207 = vpop.f32.mrb[0].mxu0
    %v208 = vadd.f32 %v129, %v207
    %v209 = vpop.f32.mrb[0].mxu0
    %210 = vdwg.mxu0
    %s211 = scalar_lea.vmem %s1, 128
    %v212 = vld [vmem:[%s211] sm:$0xff]
    %v213 = vld [vmem:[%s211 + $0x8] sm:$0xff]
    %v214 = vld [vmem:[%s211 + $0x10] sm:$0xff]
    %v215 = vld [vmem:[%s211 + $0x18] sm:$0xff]
    %v216 = vld [vmem:[%s211 + $0x20] sm:$0xff]
    %v217 = vld [vmem:[%s211 + $0x28] sm:$0xff]
    %v218 = vld [vmem:[%s211 + $0x30] sm:$0xff]
    %v219 = vld [vmem:[%s211 + $0x38] sm:$0xff]
    %220 = vrot.lane.b32.xlu0 %v24, 120
    %v221 = vpop.permute.xlu0 %220
    %222 = vrot.lane.b32.xlu0 %v25, 120
    %v223 = vpop.permute.xlu0 %222
    %v224 = vsel %vm52, %v221, 0
    %v226 = vsel %vm52, %v223, 0
    %228 = vmatprep.subr.mxu0 0.0
    %229 = vmatpush1.msra.mxu0 %v212
    %230 = vmatprep.subr.mxu0 0.0
    %231 = vmatpush1.msra.mxu0 %v213
    %232 = vmatprep.subr.mxu0 0.0
    %233 = vmatpush1.msra.mxu0 %v214
    %234 = vmatprep.subr.mxu0 0.0
    %235 = vmatpush1.msra.mxu0 %v215
    %236 = vmatprep.subr.mxu0 0.0
    %237 = vmatpush1.msra.mxu0 %v216
    %238 = vmatprep.subr.mxu0 0.0
    %239 = vmatpush1.msra.mxu0 %v217
    %240 = vmatprep.subr.mxu0 0.0
    %241 = vmatpush1.msra.mxu0 %v218
    %242 = vmatprep.subr.mxu0 0.0
    %243 = vmatpush1.msra.mxu0 %v219
    %244 = vmatprep.subr.mxu0 0.0
    %245 = vmatpush1.msra.mxu0 0.0
    %246 = vmatprep.subr.mxu0 0.0
    %247 = vmatpush1.msra.mxu0 0.0
    %248 = vmatprep.subr.mxu0 0.0
    %249 = vmatpush1.msra.mxu0 0.0
    %250 = vmatprep.subr.mxu0 0.0
    %251 = vmatpush1.msra.mxu0 0.0
    %252 = vmatprep.subr.mxu0 0.0
    %253 = vmatpush1.msra.mxu0 0.0
    %254 = vmatprep.subr.mxu0 0.0
    %255 = vmatpush1.msra.mxu0 0.0
    %256 = vmatprep.subr.mxu0 0.0
    %257 = vmatpush1.msra.mxu0 0.0
    %258 = vmatprep.subr.mxu0 0.0
    %259 = vmatpush1.msra.mxu0 0.0
    %260 = vmatprep.subr.mxu0 0.0
    %261 = vmatpush1.msra.mxu0 0.0
    %262 = vmatprep.subr.mxu0 0.0
    %263 = vmatpush1.msra.mxu0 0.0
    %264 = vmatprep.subr.mxu0 0.0
    %265 = vmatpush1.msra.mxu0 0.0
    %266 = vmatprep.subr.mxu0 0.0
    %267 = vmatpush1.msra.mxu0 0.0
    %268 = vmatprep.subr.mxu0 0.0
    %269 = vmatpush1.msra.mxu0 0.0
    %270 = vmatprep.subr.mxu0 0.0
    %271 = vmatpush1.msra.mxu0 0.0
    %272 = vmatprep.subr.mxu0 0.0
    %273 = vmatpush1.msra.mxu0 0.0
    %274 = vmatprep.subr.mxu0 0.0
    %275 = vmatpush1.msra.mxu0 0.0
    %276 = vmatprep.subr.mxu0 0.0
    %277 = vmatpush1.msra.mxu0 0.0
    %278 = vmatprep.subr.mxu0 0.0
    %279 = vmatpush1.msra.mxu0 0.0
    %280 = vmatprep.subr.mxu0 0.0
    %281 = vmatpush1.msra.mxu0 0.0
    %282 = vmatprep.subr.mxu0 0.0
    %283 = vmatpush1.msra.mxu0 0.0
    %284 = vmatprep.subr.mxu0 0.0
    %285 = vmatpush1.msra.mxu0 0.0
    %286 = vmatprep.subr.mxu0 0.0
    %287 = vmatpush1.msra.mxu0 0.0
    %288 = vmatprep.subr.mxu0 0.0
    %289 = vmatpush1.msra.mxu0 0.0
    %290 = vmatprep.subr.mxu0 0.0
    %291 = vmatpush1.msra.mxu0 0.0
    %292 = vmatprep.mubr.f32.mxu0 0.0
    %293 = vmatmul.mubr.f32.gmra.mrb[0].mxu0 %v224
    %v294 = vpop.f32.mrb[0].mxu0
    %v295 = vadd.f32 0.0, %v294
    %v296 = vpop.f32.mrb[0].mxu0
    %297 = vmatprep.mubr.f32.mxu0 0.0
    %298 = vmatmul.mubr.f32.gmra.mrb[0].mxu0 %v226
    %v299 = vpop.f32.mrb[0].mxu0
    %v300 = vadd.f32 0.0, %v299
    %v301 = vpop.f32.mrb[0].mxu0
    %302 = vdwg.mxu0
    %v303 = vadd.f32 %v203, %v295
    %v304 = vadd.f32 %v208, %v300
    %s305 = scalar_lea.vmem %s1, 192
    %v306 = vld [vmem:[%s305] sm:$0xff]
    %v307 = vld [vmem:[%s305 + $0x8] sm:$0xff]
    %v308 = vld [vmem:[%s305 + $0x10] sm:$0xff]
    %v309 = vld [vmem:[%s305 + $0x18] sm:$0xff]
    %v310 = vld [vmem:[%s305 + $0x20] sm:$0xff]
    %v311 = vld [vmem:[%s305 + $0x28] sm:$0xff]
    %v312 = vld [vmem:[%s305 + $0x30] sm:$0xff]
    %v313 = vld [vmem:[%s305 + $0x38] sm:$0xff]
    %vm315 = vcmask 1046528
    %v316 = vrot.slane %v24, 1
    %v317 = vrot.slane %v25, 1
    %v318 = vsel %vm315, %v316, %v317
    %v319 = vrot.slane %v26, 1
    %v320 = vsel %vm315, %v317, %v319
    %v321 = vsel %vm52, %v318, 0
    %v323 = vsel %vm52, %v320, 0
    %325 = vmatprep.subr.mxu0 0.0
    %326 = vmatpush1.msra.mxu0 %v306
    %327 = vmatprep.subr.mxu0 0.0
    %328 = vmatpush1.msra.mxu0 %v307
    %329 = vmatprep.subr.mxu0 0.0
    %330 = vmatpush1.msra.mxu0 %v308
    %331 = vmatprep.subr.mxu0 0.0
    %332 = vmatpush1.msra.mxu0 %v309
    %333 = vmatprep.subr.mxu0 0.0
    %334 = vmatpush1.msra.mxu0 %v310
    %335 = vmatprep.subr.mxu0 0.0
    %336 = vmatpush1.msra.mxu0 %v311
    %337 = vmatprep.subr.mxu0 0.0
    %338 = vmatpush1.msra.mxu0 %v312
    %339 = vmatprep.subr.mxu0 0.0
    %340 = vmatpush1.msra.mxu0 %v313
    %341 = vmatprep.subr.mxu0 0.0
    %342 = vmatpush1.msra.mxu0 0.0
    %343 = vmatprep.subr.mxu0 0.0
    %344 = vmatpush1.msra.mxu0 0.0
    %345 = vmatprep.subr.mxu0 0.0
    %346 = vmatpush1.msra.mxu0 0.0
    %347 = vmatprep.subr.mxu0 0.0
    %348 = vmatpush1.msra.mxu0 0.0
    %349 = vmatprep.subr.mxu0 0.0
    %350 = vmatpush1.msra.mxu0 0.0
    %351 = vmatprep.subr.mxu0 0.0
    %352 = vmatpush1.msra.mxu0 0.0
    %353 = vmatprep.subr.mxu0 0.0
    %354 = vmatpush1.msra.mxu0 0.0
    %355 = vmatprep.subr.mxu0 0.0
    %356 = vmatpush1.msra.mxu0 0.0
    %357 = vmatprep.subr.mxu0 0.0
    %358 = vmatpush1.msra.mxu0 0.0
    %359 = vmatprep.subr.mxu0 0.0
    %360 = vmatpush1.msra.mxu0 0.0
    %361 = vmatprep.subr.mxu0 0.0
    %362 = vmatpush1.msra.mxu0 0.0
    %363 = vmatprep.subr.mxu0 0.0
    %364 = vmatpush1.msra.mxu0 0.0
    %365 = vmatprep.subr.mxu0 0.0
    %366 = vmatpush1.msra.mxu0 0.0
    %367 = vmatprep.subr.mxu0 0.0
    %368 = vmatpush1.msra.mxu0 0.0
    %369 = vmatprep.subr.mxu0 0.0
    %370 = vmatpush1.msra.mxu0 0.0
    %371 = vmatprep.subr.mxu0 0.0
    %372 = vmatpush1.msra.mxu0 0.0
    %373 = vmatprep.subr.mxu0 0.0
    %374 = vmatpush1.msra.mxu0 0.0
    %375 = vmatprep.subr.mxu0 0.0
    %376 = vmatpush1.msra.mxu0 0.0
    %377 = vmatprep.subr.mxu0 0.0
    %378 = vmatpush1.msra.mxu0 0.0
    %379 = vmatprep.subr.mxu0 0.0
    %380 = vmatpush1.msra.mxu0 0.0
    %381 = vmatprep.subr.mxu0 0.0
    %382 = vmatpush1.msra.mxu0 0.0
    %383 = vmatprep.subr.mxu0 0.0
    %384 = vmatpush1.msra.mxu0 0.0
    %385 = vmatprep.subr.mxu0 0.0
    %386 = vmatpush1.msra.mxu0 0.0
    %387 = vmatprep.subr.mxu0 0.0
    %388 = vmatpush1.msra.mxu0 0.0
    %389 = vmatprep.mubr.f32.mxu0 0.0
    %390 = vmatmul.mubr.f32.gmra.mrb[0].mxu0 %v321
    %v391 = vpop.f32.mrb[0].mxu0
    %v392 = vadd.f32 0.0, %v391
    %v393 = vpop.f32.mrb[0].mxu0
    %394 = vmatprep.mubr.f32.mxu0 0.0
    %395 = vmatmul.mubr.f32.gmra.mrb[0].mxu0 %v323
    %v396 = vpop.f32.mrb[0].mxu0
    %v397 = vadd.f32 0.0, %v396
    %v398 = vpop.f32.mrb[0].mxu0
    %399 = vdwg.mxu0
    %v400 = vadd.f32 %v303, %v392
    %v401 = vadd.f32 %v304, %v397
    %s402 = scalar_lea.vmem %s1, 256
    %v403 = vld [vmem:[%s402] sm:$0xff]
    %v404 = vld [vmem:[%s402 + $0x8] sm:$0xff]
    %v405 = vld [vmem:[%s402 + $0x10] sm:$0xff]
    %v406 = vld [vmem:[%s402 + $0x18] sm:$0xff]
    %v407 = vld [vmem:[%s402 + $0x20] sm:$0xff]
    %v408 = vld [vmem:[%s402 + $0x28] sm:$0xff]
    %v409 = vld [vmem:[%s402 + $0x30] sm:$0xff]
    %v410 = vld [vmem:[%s402 + $0x38] sm:$0xff]
    %411 = vrot.lane.b32.xlu0 %v318, 124
    %v412 = vpop.permute.xlu0 %411
    %413 = vrot.lane.b32.xlu0 %v320, 124
    %v414 = vpop.permute.xlu0 %413
    %v415 = vsel %vm52, %v412, 0
    %v417 = vsel %vm52, %v414, 0
    %419 = vmatprep.subr.mxu0 0.0
    %420 = vmatpush1.msra.mxu0 %v403
    %421 = vmatprep.subr.mxu0 0.0
    %422 = vmatpush1.msra.mxu0 %v404
    %423 = vmatprep.subr.mxu0 0.0
    %424 = vmatpush1.msra.mxu0 %v405
    %425 = vmatprep.subr.mxu0 0.0
    %426 = vmatpush1.msra.mxu0 %v406
    %427 = vmatprep.subr.mxu0 0.0
    %428 = vmatpush1.msra.mxu0 %v407
    %429 = vmatprep.subr.mxu0 0.0
    %430 = vmatpush1.msra.mxu0 %v408
    %431 = vmatprep.subr.mxu0 0.0
    %432 = vmatpush1.msra.mxu0 %v409
    %433 = vmatprep.subr.mxu0 0.0
    %434 = vmatpush1.msra.mxu0 %v410
    %435 = vmatprep.subr.mxu0 0.0
    %436 = vmatpush1.msra.mxu0 0.0
    %437 = vmatprep.subr.mxu0 0.0
    %438 = vmatpush1.msra.mxu0 0.0
    %439 = vmatprep.subr.mxu0 0.0
    %440 = vmatpush1.msra.mxu0 0.0
    %441 = vmatprep.subr.mxu0 0.0
    %442 = vmatpush1.msra.mxu0 0.0
    %443 = vmatprep.subr.mxu0 0.0
    %444 = vmatpush1.msra.mxu0 0.0
    %445 = vmatprep.subr.mxu0 0.0
    %446 = vmatpush1.msra.mxu0 0.0
    %447 = vmatprep.subr.mxu0 0.0
    %448 = vmatpush1.msra.mxu0 0.0
    %449 = vmatprep.subr.mxu0 0.0
    %450 = vmatpush1.msra.mxu0 0.0
    %451 = vmatprep.subr.mxu0 0.0
    %452 = vmatpush1.msra.mxu0 0.0
    %453 = vmatprep.subr.mxu0 0.0
    %454 = vmatpush1.msra.mxu0 0.0
    %455 = vmatprep.subr.mxu0 0.0
    %456 = vmatpush1.msra.mxu0 0.0
    %457 = vmatprep.subr.mxu0 0.0
    %458 = vmatpush1.msra.mxu0 0.0
    %459 = vmatprep.subr.mxu0 0.0
    %460 = vmatpush1.msra.mxu0 0.0
    %461 = vmatprep.subr.mxu0 0.0
    %462 = vmatpush1.msra.mxu0 0.0
    %463 = vmatprep.subr.mxu0 0.0
    %464 = vmatpush1.msra.mxu0 0.0
    %465 = vmatprep.subr.mxu0 0.0
    %466 = vmatpush1.msra.mxu0 0.0
    %467 = vmatprep.subr.mxu0 0.0
    %468 = vmatpush1.msra.mxu0 0.0
    %469 = vmatprep.subr.mxu0 0.0
    %470 = vmatpush1.msra.mxu0 0.0
    %471 = vmatprep.subr.mxu0 0.0
    %472 = vmatpush1.msra.mxu0 0.0
    %473 = vmatprep.subr.mxu0 0.0
    %474 = vmatpush1.msra.mxu0 0.0
    %475 = vmatprep.subr.mxu0 0.0
    %476 = vmatpush1.msra.mxu0 0.0
    %477 = vmatprep.subr.mxu0 0.0
    %478 = vmatpush1.msra.mxu0 0.0
    %479 = vmatprep.subr.mxu0 0.0
    %480 = vmatpush1.msra.mxu0 0.0
    %481 = vmatprep.subr.mxu0 0.0
    %482 = vmatpush1.msra.mxu0 0.0
    %483 = vmatprep.mubr.f32.mxu0 0.0
    %484 = vmatmul.mubr.f32.gmra.mrb[0].mxu0 %v415
    %v485 = vpop.f32.mrb[0].mxu0
    %v486 = vadd.f32 0.0, %v485
    %v487 = vpop.f32.mrb[0].mxu0
    %488 = vmatprep.mubr.f32.mxu0 0.0
    %489 = vmatmul.mubr.f32.gmra.mrb[0].mxu0 %v417
    %v490 = vpop.f32.mrb[0].mxu0
    %v491 = vadd.f32 0.0, %v490
    %v492 = vpop.f32.mrb[0].mxu0
    %493 = vdwg.mxu0
    %v494 = vadd.f32 %v400, %v486
    %v495 = vadd.f32 %v401, %v491
    %s496 = scalar_lea.vmem %s1, 320
    %v497 = vld [vmem:[%s496] sm:$0xff]
    %v498 = vld [vmem:[%s496 + $0x8] sm:$0xff]
    %v499 = vld [vmem:[%s496 + $0x10] sm:$0xff]
    %v500 = vld [vmem:[%s496 + $0x18] sm:$0xff]
    %v501 = vld [vmem:[%s496 + $0x20] sm:$0xff]
    %v502 = vld [vmem:[%s496 + $0x28] sm:$0xff]
    %v503 = vld [vmem:[%s496 + $0x30] sm:$0xff]
    %v504 = vld [vmem:[%s496 + $0x38] sm:$0xff]
    %505 = vrot.lane.b32.xlu0 %v318, 120
    %v506 = vpop.permute.xlu0 %505
    %507 = vrot.lane.b32.xlu0 %v320, 120
    %v508 = vpop.permute.xlu0 %507
    %v509 = vsel %vm52, %v506, 0
    %v511 = vsel %vm52, %v508, 0
    %513 = vmatprep.subr.mxu0 0.0
    %514 = vmatpush1.msra.mxu0 %v497
    %515 = vmatprep.subr.mxu0 0.0
    %516 = vmatpush1.msra.mxu0 %v498
    %517 = vmatprep.subr.mxu0 0.0
    %518 = vmatpush1.msra.mxu0 %v499
    %519 = vmatprep.subr.mxu0 0.0
    %520 = vmatpush1.msra.mxu0 %v500
    %521 = vmatprep.subr.mxu0 0.0
    %522 = vmatpush1.msra.mxu0 %v501
    %523 = vmatprep.subr.mxu0 0.0
    %524 = vmatpush1.msra.mxu0 %v502
    %525 = vmatprep.subr.mxu0 0.0
    %526 = vmatpush1.msra.mxu0 %v503
    %527 = vmatprep.subr.mxu0 0.0
    %528 = vmatpush1.msra.mxu0 %v504
    %529 = vmatprep.subr.mxu0 0.0
    %530 = vmatpush1.msra.mxu0 0.0
    %531 = vmatprep.subr.mxu0 0.0
    %532 = vmatpush1.msra.mxu0 0.0
    %533 = vmatprep.subr.mxu0 0.0
    %534 = vmatpush1.msra.mxu0 0.0
    %535 = vmatprep.subr.mxu0 0.0
    %536 = vmatpush1.msra.mxu0 0.0
    %537 = vmatprep.subr.mxu0 0.0
    %538 = vmatpush1.msra.mxu0 0.0
    %539 = vmatprep.subr.mxu0 0.0
    %540 = vmatpush1.msra.mxu0 0.0
    %541 = vmatprep.subr.mxu0 0.0
    %542 = vmatpush1.msra.mxu0 0.0
    %543 = vmatprep.subr.mxu0 0.0
    %544 = vmatpush1.msra.mxu0 0.0
    %545 = vmatprep.subr.mxu0 0.0
    %546 = vmatpush1.msra.mxu0 0.0
    %547 = vmatprep.subr.mxu0 0.0
    %548 = vmatpush1.msra.mxu0 0.0
    %549 = vmatprep.subr.mxu0 0.0
    %550 = vmatpush1.msra.mxu0 0.0
    %551 = vmatprep.subr.mxu0 0.0
    %552 = vmatpush1.msra.mxu0 0.0
    %553 = vmatprep.subr.mxu0 0.0
    %554 = vmatpush1.msra.mxu0 0.0
    %555 = vmatprep.subr.mxu0 0.0
    %556 = vmatpush1.msra.mxu0 0.0
    %557 = vmatprep.subr.mxu0 0.0
    %558 = vmatpush1.msra.mxu0 0.0
    %559 = vmatprep.subr.mxu0 0.0
    %560 = vmatpush1.msra.mxu0 0.0
    %561 = vmatprep.subr.mxu0 0.0
    %562 = vmatpush1.msra.mxu0 0.0
    %563 = vmatprep.subr.mxu0 0.0
    %564 = vmatpush1.msra.mxu0 0.0
    %565 = vmatprep.subr.mxu0 0.0
    %566 = vmatpush1.msra.mxu0 0.0
    %567 = vmatprep.subr.mxu0 0.0
    %568 = vmatpush1.msra.mxu0 0.0
    %569 = vmatprep.subr.mxu0 0.0
    %570 = vmatpush1.msra.mxu0 0.0
    %571 = vmatprep.subr.mxu0 0.0
    %572 = vmatpush1.msra.mxu0 0.0
    %573 = vmatprep.subr.mxu0 0.0
    %574 = vmatpush1.msra.mxu0 0.0
    %575 = vmatprep.subr.mxu0 0.0
    %576 = vmatpush1.msra.mxu0 0.0
    %577 = vmatprep.mubr.f32.mxu0 0.0
    %578 = vmatmul.mubr.f32.gmra.mrb[0].mxu0 %v509
    %v579 = vpop.f32.mrb[0].mxu0
    %v580 = vadd.f32 0.0, %v579
    %v581 = vpop.f32.mrb[0].mxu0
    %582 = vmatprep.mubr.f32.mxu0 0.0
    %583 = vmatmul.mubr.f32.gmra.mrb[0].mxu0 %v511
    %v584 = vpop.f32.mrb[0].mxu0
    %v585 = vadd.f32 0.0, %v584
    %v586 = vpop.f32.mrb[0].mxu0
    %587 = vdwg.mxu0
    %v588 = vadd.f32 %v494, %v580
    %v589 = vadd.f32 %v495, %v585
    %s590 = scalar_lea.vmem %s1, 384
    %v591 = vld [vmem:[%s590] sm:$0xff]
    %v592 = vld [vmem:[%s590 + $0x8] sm:$0xff]
    %v593 = vld [vmem:[%s590 + $0x10] sm:$0xff]
    %v594 = vld [vmem:[%s590 + $0x18] sm:$0xff]
    %v595 = vld [vmem:[%s590 + $0x20] sm:$0xff]
    %v596 = vld [vmem:[%s590 + $0x28] sm:$0xff]
    %v597 = vld [vmem:[%s590 + $0x30] sm:$0xff]
    %v598 = vld [vmem:[%s590 + $0x38] sm:$0xff]
    %vm599 = vcmask 1045504
    %v600 = vrot.slane %v24, 2
    %v601 = vrot.slane %v25, 2
    %v602 = vsel %vm599, %v600, %v601
    %v603 = vrot.slane %v26, 2
    %v604 = vsel %vm599, %v601, %v603
    %v605 = vsel %vm52, %v602, 0
    %v607 = vsel %vm52, %v604, 0
    %609 = vmatprep.subr.mxu0 0.0
    %610 = vmatpush1.msra.mxu0 %v591
    %611 = vmatprep.subr.mxu0 0.0
    %612 = vmatpush1.msra.mxu0 %v592
    %613 = vmatprep.subr.mxu0 0.0
    %614 = vmatpush1.msra.mxu0 %v593
    %615 = vmatprep.subr.mxu0 0.0
    %616 = vmatpush1.msra.mxu0 %v594
    %617 = vmatprep.subr.mxu0 0.0
    %618 = vmatpush1.msra.mxu0 %v595
    %619 = vmatprep.subr.mxu0 0.0
    %620 = vmatpush1.msra.mxu0 %v596
    %621 = vmatprep.subr.mxu0 0.0
    %622 = vmatpush1.msra.mxu0 %v597
    %623 = vmatprep.subr.mxu0 0.0
    %624 = vmatpush1.msra.mxu0 %v598
    %625 = vmatprep.subr.mxu0 0.0
    %626 = vmatpush1.msra.mxu0 0.0
    %627 = vmatprep.subr.mxu0 0.0
    %628 = vmatpush1.msra.mxu0 0.0
    %629 = vmatprep.subr.mxu0 0.0
    %630 = vmatpush1.msra.mxu0 0.0
    %631 = vmatprep.subr.mxu0 0.0
    %632 = vmatpush1.msra.mxu0 0.0
    %633 = vmatprep.subr.mxu0 0.0
    %634 = vmatpush1.msra.mxu0 0.0
    %635 = vmatprep.subr.mxu0 0.0
    %636 = vmatpush1.msra.mxu0 0.0
    %637 = vmatprep.subr.mxu0 0.0
    %638 = vmatpush1.msra.mxu0 0.0
    %639 = vmatprep.subr.mxu0 0.0
    %640 = vmatpush1.msra.mxu0 0.0
    %641 = vmatprep.subr.mxu0 0.0
    %642 = vmatpush1.msra.mxu0 0.0
    %643 = vmatprep.subr.mxu0 0.0
    %644 = vmatpush1.msra.mxu0 0.0
    %645 = vmatprep.subr.mxu0 0.0
    %646 = vmatpush1.msra.mxu0 0.0
    %647 = vmatprep.subr.mxu0 0.0
    %648 = vmatpush1.msra.mxu0 0.0
    %649 = vmatprep.subr.mxu0 0.0
    %650 = vmatpush1.msra.mxu0 0.0
    %651 = vmatprep.subr.mxu0 0.0
    %652 = vmatpush1.msra.mxu0 0.0
    %653 = vmatprep.subr.mxu0 0.0
    %654 = vmatpush1.msra.mxu0 0.0
    %655 = vmatprep.subr.mxu0 0.0
    %656 = vmatpush1.msra.mxu0 0.0
    %657 = vmatprep.subr.mxu0 0.0
    %658 = vmatpush1.msra.mxu0 0.0
    %659 = vmatprep.subr.mxu0 0.0
    %660 = vmatpush1.msra.mxu0 0.0
    %661 = vmatprep.subr.mxu0 0.0
    %662 = vmatpush1.msra.mxu0 0.0
    %663 = vmatprep.subr.mxu0 0.0
    %664 = vmatpush1.msra.mxu0 0.0
    %665 = vmatprep.subr.mxu0 0.0
    %666 = vmatpush1.msra.mxu0 0.0
    %667 = vmatprep.subr.mxu0 0.0
    %668 = vmatpush1.msra.mxu0 0.0
    %669 = vmatprep.subr.mxu0 0.0
    %670 = vmatpush1.msra.mxu0 0.0
    %671 = vmatprep.subr.mxu0 0.0
    %672 = vmatpush1.msra.mxu0 0.0
    %673 = vmatprep.mubr.f32.mxu0 0.0
    %674 = vmatmul.mubr.f32.gmra.mrb[0].mxu0 %v605
    %v675 = vpop.f32.mrb[0].mxu0
    %v676 = vadd.f32 0.0, %v675
    %v677 = vpop.f32.mrb[0].mxu0
    %678 = vmatprep.mubr.f32.mxu0 0.0
    %679 = vmatmul.mubr.f32.gmra.mrb[0].mxu0 %v607
    %v680 = vpop.f32.mrb[0].mxu0
    %v681 = vadd.f32 0.0, %v680
    %v682 = vpop.f32.mrb[0].mxu0
    %683 = vdwg.mxu0
    %v684 = vadd.f32 %v588, %v676
    %v685 = vadd.f32 %v589, %v681
    %s686 = scalar_lea.vmem %s1, 448
    %v687 = vld [vmem:[%s686] sm:$0xff]
    %v688 = vld [vmem:[%s686 + $0x8] sm:$0xff]
    %v689 = vld [vmem:[%s686 + $0x10] sm:$0xff]
    %v690 = vld [vmem:[%s686 + $0x18] sm:$0xff]
    %v691 = vld [vmem:[%s686 + $0x20] sm:$0xff]
    %v692 = vld [vmem:[%s686 + $0x28] sm:$0xff]
    %v693 = vld [vmem:[%s686 + $0x30] sm:$0xff]
    %v694 = vld [vmem:[%s686 + $0x38] sm:$0xff]
    %695 = vrot.lane.b32.xlu0 %v602, 124
    %v696 = vpop.permute.xlu0 %695
    %697 = vrot.lane.b32.xlu0 %v604, 124
    %v698 = vpop.permute.xlu0 %697
    %v699 = vsel %vm52, %v696, 0
    %v701 = vsel %vm52, %v698, 0
    %703 = vmatprep.subr.mxu0 0.0
    %704 = vmatpush1.msra.mxu0 %v687
    %705 = vmatprep.subr.mxu0 0.0
    %706 = vmatpush1.msra.mxu0 %v688
    %707 = vmatprep.subr.mxu0 0.0
    %708 = vmatpush1.msra.mxu0 %v689
    %709 = vmatprep.subr.mxu0 0.0
    %710 = vmatpush1.msra.mxu0 %v690
    %711 = vmatprep.subr.mxu0 0.0
    %712 = vmatpush1.msra.mxu0 %v691
    %713 = vmatprep.subr.mxu0 0.0
    %714 = vmatpush1.msra.mxu0 %v692
    %715 = vmatprep.subr.mxu0 0.0
    %716 = vmatpush1.msra.mxu0 %v693
    %717 = vmatprep.subr.mxu0 0.0
    %718 = vmatpush1.msra.mxu0 %v694
    %719 = vmatprep.subr.mxu0 0.0
    %720 = vmatpush1.msra.mxu0 0.0
    %721 = vmatprep.subr.mxu0 0.0
    %722 = vmatpush1.msra.mxu0 0.0
    %723 = vmatprep.subr.mxu0 0.0
    %724 = vmatpush1.msra.mxu0 0.0
    %725 = vmatprep.subr.mxu0 0.0
    %726 = vmatpush1.msra.mxu0 0.0
    %727 = vmatprep.subr.mxu0 0.0
    %728 = vmatpush1.msra.mxu0 0.0
    %729 = vmatprep.subr.mxu0 0.0
    %730 = vmatpush1.msra.mxu0 0.0
    %731 = vmatprep.subr.mxu0 0.0
    %732 = vmatpush1.msra.mxu0 0.0
    %733 = vmatprep.subr.mxu0 0.0
    %734 = vmatpush1.msra.mxu0 0.0
    %735 = vmatprep.subr.mxu0 0.0
    %736 = vmatpush1.msra.mxu0 0.0
    %737 = vmatprep.subr.mxu0 0.0
    %738 = vmatpush1.msra.mxu0 0.0
    %739 = vmatprep.subr.mxu0 0.0
    %740 = vmatpush1.msra.mxu0 0.0
    %741 = vmatprep.subr.mxu0 0.0
    %742 = vmatpush1.msra.mxu0 0.0
    %743 = vmatprep.subr.mxu0 0.0
    %744 = vmatpush1.msra.mxu0 0.0
    %745 = vmatprep.subr.mxu0 0.0
    %746 = vmatpush1.msra.mxu0 0.0
    %747 = vmatprep.subr.mxu0 0.0
    %748 = vmatpush1.msra.mxu0 0.0
    %749 = vmatprep.subr.mxu0 0.0
    %750 = vmatpush1.msra.mxu0 0.0
    %751 = vmatprep.subr.mxu0 0.0
    %752 = vmatpush1.msra.mxu0 0.0
    %753 = vmatprep.subr.mxu0 0.0
    %754 = vmatpush1.msra.mxu0 0.0
    %755 = vmatprep.subr.mxu0 0.0
    %756 = vmatpush1.msra.mxu0 0.0
    %757 = vmatprep.subr.mxu0 0.0
    %758 = vmatpush1.msra.mxu0 0.0
    %759 = vmatprep.subr.mxu0 0.0
    %760 = vmatpush1.msra.mxu0 0.0
    %761 = vmatprep.subr.mxu0 0.0
    %762 = vmatpush1.msra.mxu0 0.0
    %763 = vmatprep.subr.mxu0 0.0
    %764 = vmatpush1.msra.mxu0 0.0
    %765 = vmatprep.subr.mxu0 0.0
    %766 = vmatpush1.msra.mxu0 0.0
    %767 = vmatprep.mubr.f32.mxu0 0.0
    %768 = vmatmul.mubr.f32.gmra.mrb[0].mxu0 %v699
    %v769 = vpop.f32.mrb[0].mxu0
    %v770 = vadd.f32 0.0, %v769
    %v771 = vpop.f32.mrb[0].mxu0
    %772 = vmatprep.mubr.f32.mxu0 0.0
    %773 = vmatmul.mubr.f32.gmra.mrb[0].mxu0 %v701
    %v774 = vpop.f32.mrb[0].mxu0
    %v775 = vadd.f32 0.0, %v774
    %v776 = vpop.f32.mrb[0].mxu0
    %777 = vdwg.mxu0
    %v778 = vadd.f32 %v684, %v770
    %v779 = vadd.f32 %v685, %v775
    %s780 = scalar_lea.vmem %s1, 512
    %v781 = vld [vmem:[%s780] sm:$0xff]
    %v782 = vld [vmem:[%s780 + $0x8] sm:$0xff]
    %v783 = vld [vmem:[%s780 + $0x10] sm:$0xff]
    %v784 = vld [vmem:[%s780 + $0x18] sm:$0xff]
    %v785 = vld [vmem:[%s780 + $0x20] sm:$0xff]
    %v786 = vld [vmem:[%s780 + $0x28] sm:$0xff]
    %v787 = vld [vmem:[%s780 + $0x30] sm:$0xff]
    %v788 = vld [vmem:[%s780 + $0x38] sm:$0xff]
    %789 = vrot.lane.b32.xlu0 %v602, 120
    %v790 = vpop.permute.xlu0 %789
    %791 = vrot.lane.b32.xlu0 %v604, 120
    %v792 = vpop.permute.xlu0 %791
    %v793 = vsel %vm52, %v790, 0
    %v795 = vsel %vm52, %v792, 0
    %797 = vmatprep.subr.mxu0 0.0
    %798 = vmatpush1.msra.mxu0 %v781
    %799 = vmatprep.subr.mxu0 0.0
    %800 = vmatpush1.msra.mxu0 %v782
    %801 = vmatprep.subr.mxu0 0.0
    %802 = vmatpush1.msra.mxu0 %v783
    %803 = vmatprep.subr.mxu0 0.0
    %804 = vmatpush1.msra.mxu0 %v784
    %805 = vmatprep.subr.mxu0 0.0
    %806 = vmatpush1.msra.mxu0 %v785
    %807 = vmatprep.subr.mxu0 0.0
    %808 = vmatpush1.msra.mxu0 %v786
    %809 = vmatprep.subr.mxu0 0.0
    %810 = vmatpush1.msra.mxu0 %v787
    %811 = vmatprep.subr.mxu0 0.0
    %812 = vmatpush1.msra.mxu0 %v788
    %813 = vmatprep.subr.mxu0 0.0
    %814 = vmatpush1.msra.mxu0 0.0
    %815 = vmatprep.subr.mxu0 0.0
    %816 = vmatpush1.msra.mxu0 0.0
    %817 = vmatprep.subr.mxu0 0.0
    %818 = vmatpush1.msra.mxu0 0.0
    %819 = vmatprep.subr.mxu0 0.0
    %820 = vmatpush1.msra.mxu0 0.0
    %821 = vmatprep.subr.mxu0 0.0
    %822 = vmatpush1.msra.mxu0 0.0
    %823 = vmatprep.subr.mxu0 0.0
    %824 = vmatpush1.msra.mxu0 0.0
    %825 = vmatprep.subr.mxu0 0.0
    %826 = vmatpush1.msra.mxu0 0.0
    %827 = vmatprep.subr.mxu0 0.0
    %828 = vmatpush1.msra.mxu0 0.0
    %829 = vmatprep.subr.mxu0 0.0
    %830 = vmatpush1.msra.mxu0 0.0
    %831 = vmatprep.subr.mxu0 0.0
    %832 = vmatpush1.msra.mxu0 0.0
    %833 = vmatprep.subr.mxu0 0.0
    %834 = vmatpush1.msra.mxu0 0.0
    %835 = vmatprep.subr.mxu0 0.0
    %836 = vmatpush1.msra.mxu0 0.0
    %837 = vmatprep.subr.mxu0 0.0
    %838 = vmatpush1.msra.mxu0 0.0
    %839 = vmatprep.subr.mxu0 0.0
    %840 = vmatpush1.msra.mxu0 0.0
    %841 = vmatprep.subr.mxu0 0.0
    %842 = vmatpush1.msra.mxu0 0.0
    %843 = vmatprep.subr.mxu0 0.0
    %844 = vmatpush1.msra.mxu0 0.0
    %845 = vmatprep.subr.mxu0 0.0
    %846 = vmatpush1.msra.mxu0 0.0
    %847 = vmatprep.subr.mxu0 0.0
    %848 = vmatpush1.msra.mxu0 0.0
    %849 = vmatprep.subr.mxu0 0.0
    %850 = vmatpush1.msra.mxu0 0.0
    %851 = vmatprep.subr.mxu0 0.0
    %852 = vmatpush1.msra.mxu0 0.0
    %853 = vmatprep.subr.mxu0 0.0
    %854 = vmatpush1.msra.mxu0 0.0
    %855 = vmatprep.subr.mxu0 0.0
    %856 = vmatpush1.msra.mxu0 0.0
    %857 = vmatprep.subr.mxu0 0.0
    %858 = vmatpush1.msra.mxu0 0.0
    %859 = vmatprep.subr.mxu0 0.0
    %860 = vmatpush1.msra.mxu0 0.0
    %861 = vmatprep.mubr.f32.mxu0 0.0
    %862 = vmatmul.mubr.f32.gmra.mrb[0].mxu0 %v793
    %v863 = vpop.f32.mrb[0].mxu0
    %v864 = vadd.f32 0.0, %v863
    %v865 = vpop.f32.mrb[0].mxu0
    %866 = vmatprep.mubr.f32.mxu0 0.0
    %867 = vmatmul.mubr.f32.gmra.mrb[0].mxu0 %v795
    %v868 = vpop.f32.mrb[0].mxu0
    %v869 = vadd.f32 0.0, %v868
    %v870 = vpop.f32.mrb[0].mxu0
    %871 = vdwg.mxu0
    %v872 = vadd.f32 %v778, %v864
    %v873 = vadd.f32 %v779, %v869
    %v874 = vld [vmem:[%s2] sm:$0x1]
    %v876 = vlaneseq
    %v877 = vshrl.u32 %v876, 7
    %v878 = vsub.s32 0, %v877
    %v879 = vrot.slane %v874, %v878
    %v881 = vadd.f32 %v872, %v879
    %v882 = vadd.f32 %v873, %v879
    %v883 = vmax.f32 %v881, 0.0
    %v884 = vmax.f32 %v882, 0.0
    %v887 = vrot.slane %v27, 2
    %v888 = vsel %vm599, %v603, %v887
    %v889 = vrot.slane %v28, 2
    %v890 = vsel %vm599, %v887, %v889
    %891 = vrot.lane.b32.xlu0 %v888, 124
    %v892 = vpop.permute.xlu0 %891
    %893 = vrot.lane.b32.xlu0 %v890, 124
    %v894 = vpop.permute.xlu0 %893
    %v895 = vsel %vm52, %v892, 0
    %v897 = vsel %vm52, %v894, 0
    %899 = vmatprep.subr.mxu0 0.0
    %900 = vmatpush1.msra.mxu0 %v38
    %901 = vmatprep.subr.mxu0 0.0
    %902 = vmatpush1.msra.mxu0 %v39
    %903 = vmatprep.subr.mxu0 0.0
    %904 = vmatpush1.msra.mxu0 %v40
    %905 = vmatprep.subr.mxu0 0.0
    %906 = vmatpush1.msra.mxu0 %v41
    %907 = vmatprep.subr.mxu0 0.0
    %908 = vmatpush1.msra.mxu0 %v42
    %909 = vmatprep.subr.mxu0 0.0
    %910 = vmatpush1.msra.mxu0 %v43
    %911 = vmatprep.subr.mxu0 0.0
    %912 = vmatpush1.msra.mxu0 %v44
    %913 = vmatprep.subr.mxu0 0.0
    %914 = vmatpush1.msra.mxu0 %v45
    %915 = vmatprep.subr.mxu0 0.0
    %916 = vmatpush1.msra.mxu0 0.0
    %917 = vmatprep.subr.mxu0 0.0
    %918 = vmatpush1.msra.mxu0 0.0
    %919 = vmatprep.subr.mxu0 0.0
    %920 = vmatpush1.msra.mxu0 0.0
    %921 = vmatprep.subr.mxu0 0.0
    %922 = vmatpush1.msra.mxu0 0.0
    %923 = vmatprep.subr.mxu0 0.0
    %924 = vmatpush1.msra.mxu0 0.0
    %925 = vmatprep.subr.mxu0 0.0
    %926 = vmatpush1.msra.mxu0 0.0
    %927 = vmatprep.subr.mxu0 0.0
    %928 = vmatpush1.msra.mxu0 0.0
    %929 = vmatprep.subr.mxu0 0.0
    %930 = vmatpush1.msra.mxu0 0.0
    %931 = vmatprep.subr.mxu0 0.0
    %932 = vmatpush1.msra.mxu0 0.0
    %933 = vmatprep.subr.mxu0 0.0
    %934 = vmatpush1.msra.mxu0 0.0
    %935 = vmatprep.subr.mxu0 0.0
    %936 = vmatpush1.msra.mxu0 0.0
    %937 = vmatprep.subr.mxu0 0.0
    %938 = vmatpush1.msra.mxu0 0.0
    %939 = vmatprep.subr.mxu0 0.0
    %940 = vmatpush1.msra.mxu0 0.0
    %941 = vmatprep.subr.mxu0 0.0
    %942 = vmatpush1.msra.mxu0 0.0
    %943 = vmatprep.subr.mxu0 0.0
    %944 = vmatpush1.msra.mxu0 0.0
    %945 = vmatprep.subr.mxu0 0.0
    %946 = vmatpush1.msra.mxu0 0.0
    %947 = vmatprep.subr.mxu0 0.0
    %948 = vmatpush1.msra.mxu0 0.0
    %949 = vmatprep.subr.mxu0 0.0
    %950 = vmatpush1.msra.mxu0 0.0
    %951 = vmatprep.subr.mxu0 0.0
    %952 = vmatpush1.msra.mxu0 0.0
    %953 = vmatprep.subr.mxu0 0.0
    %954 = vmatpush1.msra.mxu0 0.0
    %955 = vmatprep.subr.mxu0 0.0
    %956 = vmatpush1.msra.mxu0 0.0
    %957 = vmatprep.subr.mxu0 0.0
    %958 = vmatpush1.msra.mxu0 0.0
    %959 = vmatprep.subr.mxu0 0.0
    %960 = vmatpush1.msra.mxu0 0.0
    %961 = vmatprep.subr.mxu0 0.0
    %962 = vmatpush1.msra.mxu0 0.0
    %963 = vmatprep.mubr.f32.mxu0 0.0
    %964 = vmatmul.mubr.f32.gmra.mrb[0].mxu0 %v895
    %v965 = vpop.f32.mrb[0].mxu0
    %v966 = vadd.f32 0.0, %v965
    %v967 = vpop.f32.mrb[0].mxu0
    %968 = vmatprep.mubr.f32.mxu0 0.0
    %969 = vmatmul.mubr.f32.gmra.mrb[0].mxu0 %v897
    %v970 = vpop.f32.mrb[0].mxu0
    %v971 = vadd.f32 0.0, %v970
    %v972 = vpop.f32.mrb[0].mxu0
    %973 = vdwg.mxu0
    %v974 = vsel %vm52, %v888, 0
    %v976 = vsel %vm52, %v890, 0
    %978 = vmatprep.subr.mxu0 0.0
    %979 = vmatpush1.msra.mxu0 %v29
    %980 = vmatprep.subr.mxu0 0.0
    %981 = vmatpush1.msra.mxu0 %v30
    %982 = vmatprep.subr.mxu0 0.0
    %983 = vmatpush1.msra.mxu0 %v31
    %984 = vmatprep.subr.mxu0 0.0
    %985 = vmatpush1.msra.mxu0 %v32
    %986 = vmatprep.subr.mxu0 0.0
    %987 = vmatpush1.msra.mxu0 %v33
    %988 = vmatprep.subr.mxu0 0.0
    %989 = vmatpush1.msra.mxu0 %v34
    %990 = vmatprep.subr.mxu0 0.0
    %991 = vmatpush1.msra.mxu0 %v35
    %992 = vmatprep.subr.mxu0 0.0
    %993 = vmatpush1.msra.mxu0 %v36
    %994 = vmatprep.subr.mxu0 0.0
    %995 = vmatpush1.msra.mxu0 0.0
    %996 = vmatprep.subr.mxu0 0.0
    %997 = vmatpush1.msra.mxu0 0.0
    %998 = vmatprep.subr.mxu0 0.0
    %999 = vmatpush1.msra.mxu0 0.0
    %1000 = vmatprep.subr.mxu0 0.0
    %1001 = vmatpush1.msra.mxu0 0.0
    %1002 = vmatprep.subr.mxu0 0.0
    %1003 = vmatpush1.msra.mxu0 0.0
    %1004 = vmatprep.subr.mxu0 0.0
    %1005 = vmatpush1.msra.mxu0 0.0
    %1006 = vmatprep.subr.mxu0 0.0
    %1007 = vmatpush1.msra.mxu0 0.0
    %1008 = vmatprep.subr.mxu0 0.0
    %1009 = vmatpush1.msra.mxu0 0.0
    %1010 = vmatprep.subr.mxu0 0.0
    %1011 = vmatpush1.msra.mxu0 0.0
    %1012 = vmatprep.subr.mxu0 0.0
    %1013 = vmatpush1.msra.mxu0 0.0
    %1014 = vmatprep.subr.mxu0 0.0
    %1015 = vmatpush1.msra.mxu0 0.0
    %1016 = vmatprep.subr.mxu0 0.0
    %1017 = vmatpush1.msra.mxu0 0.0
    %1018 = vmatprep.subr.mxu0 0.0
    %1019 = vmatpush1.msra.mxu0 0.0
    %1020 = vmatprep.subr.mxu0 0.0
    %1021 = vmatpush1.msra.mxu0 0.0
    %1022 = vmatprep.subr.mxu0 0.0
    %1023 = vmatpush1.msra.mxu0 0.0
    %1024 = vmatprep.subr.mxu0 0.0
    %1025 = vmatpush1.msra.mxu0 0.0
    %1026 = vmatprep.subr.mxu0 0.0
    %1027 = vmatpush1.msra.mxu0 0.0
    %1028 = vmatprep.subr.mxu0 0.0
    %1029 = vmatpush1.msra.mxu0 0.0
    %1030 = vmatprep.subr.mxu0 0.0
    %1031 = vmatpush1.msra.mxu0 0.0
    %1032 = vmatprep.subr.mxu0 0.0
    %1033 = vmatpush1.msra.mxu0 0.0
    %1034 = vmatprep.subr.mxu0 0.0
    %1035 = vmatpush1.msra.mxu0 0.0
    %1036 = vmatprep.subr.mxu0 0.0
    %1037 = vmatpush1.msra.mxu0 0.0
    %1038 = vmatprep.subr.mxu0 0.0
    %1039 = vmatpush1.msra.mxu0 0.0
    %1040 = vmatprep.subr.mxu0 0.0
    %1041 = vmatpush1.msra.mxu0 0.0
    %1042 = vmatprep.mubr.f32.mxu0 0.0
    %1043 = vmatmul.mubr.f32.gmra.mrb[0].mxu0 %v974
    %v1044 = vpop.f32.mrb[0].mxu0
    %v1045 = vadd.f32 %v966, %v1044
    %v1046 = vpop.f32.mrb[0].mxu0
    %1047 = vmatprep.mubr.f32.mxu0 0.0
    %1048 = vmatmul.mubr.f32.gmra.mrb[0].mxu0 %v976
    %v1049 = vpop.f32.mrb[0].mxu0
    %v1050 = vadd.f32 %v971, %v1049
    %v1051 = vpop.f32.mrb[0].mxu0
    %1052 = vdwg.mxu0
    %1053 = vrot.lane.b32.xlu0 %v888, 120
    %v1054 = vpop.permute.xlu0 %1053
    %1055 = vrot.lane.b32.xlu0 %v890, 120
    %v1056 = vpop.permute.xlu0 %1055
    %v1057 = vsel %vm52, %v1054, 0
    %v1059 = vsel %vm52, %v1056, 0
    %1061 = vmatprep.subr.mxu0 0.0
    %1062 = vmatpush1.msra.mxu0 %v212
    %1063 = vmatprep.subr.mxu0 0.0
    %1064 = vmatpush1.msra.mxu0 %v213
    %1065 = vmatprep.subr.mxu0 0.0
    %1066 = vmatpush1.msra.mxu0 %v214
    %1067 = vmatprep.subr.mxu0 0.0
    %1068 = vmatpush1.msra.mxu0 %v215
    %1069 = vmatprep.subr.mxu0 0.0
    %1070 = vmatpush1.msra.mxu0 %v216
    %1071 = vmatprep.subr.mxu0 0.0
    %1072 = vmatpush1.msra.mxu0 %v217
    %1073 = vmatprep.subr.mxu0 0.0
    %1074 = vmatpush1.msra.mxu0 %v218
    %1075 = vmatprep.subr.mxu0 0.0
    %1076 = vmatpush1.msra.mxu0 %v219
    %1077 = vmatprep.subr.mxu0 0.0
    %1078 = vmatpush1.msra.mxu0 0.0
    %1079 = vmatprep.subr.mxu0 0.0
    %1080 = vmatpush1.msra.mxu0 0.0
    %1081 = vmatprep.subr.mxu0 0.0
    %1082 = vmatpush1.msra.mxu0 0.0
    %1083 = vmatprep.subr.mxu0 0.0
    %1084 = vmatpush1.msra.mxu0 0.0
    %1085 = vmatprep.subr.mxu0 0.0
    %1086 = vmatpush1.msra.mxu0 0.0
    %1087 = vmatprep.subr.mxu0 0.0
    %1088 = vmatpush1.msra.mxu0 0.0
    %1089 = vmatprep.subr.mxu0 0.0
    %1090 = vmatpush1.msra.mxu0 0.0
    %1091 = vmatprep.subr.mxu0 0.0
    %1092 = vmatpush1.msra.mxu0 0.0
    %1093 = vmatprep.subr.mxu0 0.0
    %1094 = vmatpush1.msra.mxu0 0.0
    %1095 = vmatprep.subr.mxu0 0.0
    %1096 = vmatpush1.msra.mxu0 0.0
    %1097 = vmatprep.subr.mxu0 0.0
    %1098 = vmatpush1.msra.mxu0 0.0
    %1099 = vmatprep.subr.mxu0 0.0
    %1100 = vmatpush1.msra.mxu0 0.0
    %1101 = vmatprep.subr.mxu0 0.0
    %1102 = vmatpush1.msra.mxu0 0.0
    %1103 = vmatprep.subr.mxu0 0.0
    %1104 = vmatpush1.msra.mxu0 0.0
    %1105 = vmatprep.subr.mxu0 0.0
    %1106 = vmatpush1.msra.mxu0 0.0
    %1107 = vmatprep.subr.mxu0 0.0
    %1108 = vmatpush1.msra.mxu0 0.0
    %1109 = vmatprep.subr.mxu0 0.0
    %1110 = vmatpush1.msra.mxu0 0.0
    %1111 = vmatprep.subr.mxu0 0.0
    %1112 = vmatpush1.msra.mxu0 0.0
    %1113 = vmatprep.subr.mxu0 0.0
    %1114 = vmatpush1.msra.mxu0 0.0
    %1115 = vmatprep.subr.mxu0 0.0
    %1116 = vmatpush1.msra.mxu0 0.0
    %1117 = vmatprep.subr.mxu0 0.0
    %1118 = vmatpush1.msra.mxu0 0.0
    %1119 = vmatprep.subr.mxu0 0.0
    %1120 = vmatpush1.msra.mxu0 0.0
    %1121 = vmatprep.subr.mxu0 0.0
    %1122 = vmatpush1.msra.mxu0 0.0
    %1123 = vmatprep.subr.mxu0 0.0
    %1124 = vmatpush1.msra.mxu0 0.0
    %1125 = vmatprep.mubr.f32.mxu0 0.0
    %1126 = vmatmul.mubr.f32.gmra.mrb[0].mxu0 %v1057
    %v1127 = vpop.f32.mrb[0].mxu0
    %v1128 = vadd.f32 0.0, %v1127
    %v1129 = vpop.f32.mrb[0].mxu0
    %1130 = vmatprep.mubr.f32.mxu0 0.0
    %1131 = vmatmul.mubr.f32.gmra.mrb[0].mxu0 %v1059
    %v1132 = vpop.f32.mrb[0].mxu0
    %v1133 = vadd.f32 0.0, %v1132
    %v1134 = vpop.f32.mrb[0].mxu0
    %1135 = vdwg.mxu0
    %v1136 = vadd.f32 %v1045, %v1128
    %v1137 = vadd.f32 %v1050, %v1133
    %vm1138 = vcmask 1044480
    %v1139 = vrot.slane %v26, 3
    %v1140 = vrot.slane %v27, 3
    %v1141 = vsel %vm1138, %v1139, %v1140
    %v1142 = vrot.slane %v28, 3
    %v1143 = vsel %vm1138, %v1140, %v1142
    %v1144 = vsel %vm52, %v1141, 0
    %v1146 = vsel %vm52, %v1143, 0
    %1148 = vmatprep.subr.mxu0 0.0
    %1149 = vmatpush1.msra.mxu0 %v306
    %1150 = vmatprep.subr.mxu0 0.0
    %1151 = vmatpush1.msra.mxu0 %v307
    %1152 = vmatprep.subr.mxu0 0.0
    %1153 = vmatpush1.msra.mxu0 %v308
    %1154 = vmatprep.subr.mxu0 0.0
    %1155 = vmatpush1.msra.mxu0 %v309
    %1156 = vmatprep.subr.mxu0 0.0
    %1157 = vmatpush1.msra.mxu0 %v310
    %1158 = vmatprep.subr.mxu0 0.0
    %1159 = vmatpush1.msra.mxu0 %v311
    %1160 = vmatprep.subr.mxu0 0.0
    %1161 = vmatpush1.msra.mxu0 %v312
    %1162 = vmatprep.subr.mxu0 0.0
    %1163 = vmatpush1.msra.mxu0 %v313
    %1164 = vmatprep.subr.mxu0 0.0
    %1165 = vmatpush1.msra.mxu0 0.0
    %1166 = vmatprep.subr.mxu0 0.0
    %1167 = vmatpush1.msra.mxu0 0.0
    %1168 = vmatprep.subr.mxu0 0.0
    %1169 = vmatpush1.msra.mxu0 0.0
    %1170 = vmatprep.subr.mxu0 0.0
    %1171 = vmatpush1.msra.mxu0 0.0
    %1172 = vmatprep.subr.mxu0 0.0
    %1173 = vmatpush1.msra.mxu0 0.0
    %1174 = vmatprep.subr.mxu0 0.0
    %1175 = vmatpush1.msra.mxu0 0.0
    %1176 = vmatprep.subr.mxu0 0.0
    %1177 = vmatpush1.msra.mxu0 0.0
    %1178 = vmatprep.subr.mxu0 0.0
    %1179 = vmatpush1.msra.mxu0 0.0
    %1180 = vmatprep.subr.mxu0 0.0
    %1181 = vmatpush1.msra.mxu0 0.0
    %1182 = vmatprep.subr.mxu0 0.0
    %1183 = vmatpush1.msra.mxu0 0.0
    %1184 = vmatprep.subr.mxu0 0.0
    %1185 = vmatpush1.msra.mxu0 0.0
    %1186 = vmatprep.subr.mxu0 0.0
    %1187 = vmatpush1.msra.mxu0 0.0
    %1188 = vmatprep.subr.mxu0 0.0
    %1189 = vmatpush1.msra.mxu0 0.0
    %1190 = vmatprep.subr.mxu0 0.0
    %1191 = vmatpush1.msra.mxu0 0.0
    %1192 = vmatprep.subr.mxu0 0.0
    %1193 = vmatpush1.msra.mxu0 0.0
    %1194 = vmatprep.subr.mxu0 0.0
    %1195 = vmatpush1.msra.mxu0 0.0
    %1196 = vmatprep.subr.mxu0 0.0
    %1197 = vmatpush1.msra.mxu0 0.0
    %1198 = vmatprep.subr.mxu0 0.0
    %1199 = vmatpush1.msra.mxu0 0.0
    %1200 = vmatprep.subr.mxu0 0.0
    %1201 = vmatpush1.msra.mxu0 0.0
    %1202 = vmatprep.subr.mxu0 0.0
    %1203 = vmatpush1.msra.mxu0 0.0
    %1204 = vmatprep.subr.mxu0 0.0
    %1205 = vmatpush1.msra.mxu0 0.0
    %1206 = vmatprep.subr.mxu0 0.0
    %1207 = vmatpush1.msra.mxu0 0.0
    %1208 = vmatprep.subr.mxu0 0.0
    %1209 = vmatpush1.msra.mxu0 0.0
    %1210 = vmatprep.subr.mxu0 0.0
    %1211 = vmatpush1.msra.mxu0 0.0
    %1212 = vmatprep.mubr.f32.mxu0 0.0
    %1213 = vmatmul.mubr.f32.gmra.mrb[0].mxu0 %v1144
    %v1214 = vpop.f32.mrb[0].mxu0
    %v1215 = vadd.f32 0.0, %v1214
    %v1216 = vpop.f32.mrb[0].mxu0
    %1217 = vmatprep.mubr.f32.mxu0 0.0
    %1218 = vmatmul.mubr.f32.gmra.mrb[0].mxu0 %v1146
    %v1219 = vpop.f32.mrb[0].mxu0
    %v1220 = vadd.f32 0.0, %v1219
    %v1221 = vpop.f32.mrb[0].mxu0
    %1222 = vdwg.mxu0
    %v1223 = vadd.f32 %v1136, %v1215
    %v1224 = vadd.f32 %v1137, %v1220
    %1225 = vrot.lane.b32.xlu0 %v1141, 124
    %v1226 = vpop.permute.xlu0 %1225
    %1227 = vrot.lane.b32.xlu0 %v1143, 124
    %v1228 = vpop.permute.xlu0 %1227
    %v1229 = vsel %vm52, %v1226, 0
    %v1231 = vsel %vm52, %v1228, 0
    %1233 = vmatprep.subr.mxu0 0.0
    %1234 = vmatpush1.msra.mxu0 %v403
    %1235 = vmatprep.subr.mxu0 0.0
    %1236 = vmatpush1.msra.mxu0 %v404
    %1237 = vmatprep.subr.mxu0 0.0
    %1238 = vmatpush1.msra.mxu0 %v405
    %1239 = vmatprep.subr.mxu0 0.0
    %1240 = vmatpush1.msra.mxu0 %v406
    %1241 = vmatprep.subr.mxu0 0.0
    %1242 = vmatpush1.msra.mxu0 %v407
    %1243 = vmatprep.subr.mxu0 0.0
    %1244 = vmatpush1.msra.mxu0 %v408
    %1245 = vmatprep.subr.mxu0 0.0
    %1246 = vmatpush1.msra.mxu0 %v409
    %1247 = vmatprep.subr.mxu0 0.0
    %1248 = vmatpush1.msra.mxu0 %v410
    %1249 = vmatprep.subr.mxu0 0.0
    %1250 = vmatpush1.msra.mxu0 0.0
    %1251 = vmatprep.subr.mxu0 0.0
    %1252 = vmatpush1.msra.mxu0 0.0
    %1253 = vmatprep.subr.mxu0 0.0
    %1254 = vmatpush1.msra.mxu0 0.0
    %1255 = vmatprep.subr.mxu0 0.0
    %1256 = vmatpush1.msra.mxu0 0.0
    %1257 = vmatprep.subr.mxu0 0.0
    %1258 = vmatpush1.msra.mxu0 0.0
    %1259 = vmatprep.subr.mxu0 0.0
    %1260 = vmatpush1.msra.mxu0 0.0
    %1261 = vmatprep.subr.mxu0 0.0
    %1262 = vmatpush1.msra.mxu0 0.0
    %1263 = vmatprep.subr.mxu0 0.0
    %1264 = vmatpush1.msra.mxu0 0.0
    %1265 = vmatprep.subr.mxu0 0.0
    %1266 = vmatpush1.msra.mxu0 0.0
    %1267 = vmatprep.subr.mxu0 0.0
    %1268 = vmatpush1.msra.mxu0 0.0
    %1269 = vmatprep.subr.mxu0 0.0
    %1270 = vmatpush1.msra.mxu0 0.0
    %1271 = vmatprep.subr.mxu0 0.0
    %1272 = vmatpush1.msra.mxu0 0.0
    %1273 = vmatprep.subr.mxu0 0.0
    %1274 = vmatpush1.msra.mxu0 0.0
    %1275 = vmatprep.subr.mxu0 0.0
    %1276 = vmatpush1.msra.mxu0 0.0
    %1277 = vmatprep.subr.mxu0 0.0
    %1278 = vmatpush1.msra.mxu0 0.0
    %1279 = vmatprep.subr.mxu0 0.0
    %1280 = vmatpush1.msra.mxu0 0.0
    %1281 = vmatprep.subr.mxu0 0.0
    %1282 = vmatpush1.msra.mxu0 0.0
    %1283 = vmatprep.subr.mxu0 0.0
    %1284 = vmatpush1.msra.mxu0 0.0
    %1285 = vmatprep.subr.mxu0 0.0
    %1286 = vmatpush1.msra.mxu0 0.0
    %1287 = vmatprep.subr.mxu0 0.0
    %1288 = vmatpush1.msra.mxu0 0.0
    %1289 = vmatprep.subr.mxu0 0.0
    %1290 = vmatpush1.msra.mxu0 0.0
    %1291 = vmatprep.subr.mxu0 0.0
    %1292 = vmatpush1.msra.mxu0 0.0
    %1293 = vmatprep.subr.mxu0 0.0
    %1294 = vmatpush1.msra.mxu0 0.0
    %1295 = vmatprep.subr.mxu0 0.0
    %1296 = vmatpush1.msra.mxu0 0.0
    %1297 = vmatprep.mubr.f32.mxu0 0.0
    %1298 = vmatmul.mubr.f32.gmra.mrb[0].mxu0 %v1229
    %v1299 = vpop.f32.mrb[0].mxu0
    %v1300 = vadd.f32 0.0, %v1299
    %v1301 = vpop.f32.mrb[0].mxu0
    %1302 = vmatprep.mubr.f32.mxu0 0.0
    %1303 = vmatmul.mubr.f32.gmra.mrb[0].mxu0 %v1231
    %v1304 = vpop.f32.mrb[0].mxu0
    %v1305 = vadd.f32 0.0, %v1304
    %v1306 = vpop.f32.mrb[0].mxu0
    %1307 = vdwg.mxu0
    %v1308 = vadd.f32 %v1223, %v1300
    %v1309 = vadd.f32 %v1224, %v1305
    %1310 = vrot.lane.b32.xlu0 %v1141, 120
    %v1311 = vpop.permute.xlu0 %1310
    %1312 = vrot.lane.b32.xlu0 %v1143, 120
    %v1313 = vpop.permute.xlu0 %1312
    %v1314 = vsel %vm52, %v1311, 0
    %v1316 = vsel %vm52, %v1313, 0
    %1318 = vmatprep.subr.mxu0 0.0
    %1319 = vmatpush1.msra.mxu0 %v497
    %1320 = vmatprep.subr.mxu0 0.0
    %1321 = vmatpush1.msra.mxu0 %v498
    %1322 = vmatprep.subr.mxu0 0.0
    %1323 = vmatpush1.msra.mxu0 %v499
    %1324 = vmatprep.subr.mxu0 0.0
    %1325 = vmatpush1.msra.mxu0 %v500
    %1326 = vmatprep.subr.mxu0 0.0
    %1327 = vmatpush1.msra.mxu0 %v501
    %1328 = vmatprep.subr.mxu0 0.0
    %1329 = vmatpush1.msra.mxu0 %v502
    %1330 = vmatprep.subr.mxu0 0.0
    %1331 = vmatpush1.msra.mxu0 %v503
    %1332 = vmatprep.subr.mxu0 0.0
    %1333 = vmatpush1.msra.mxu0 %v504
    %1334 = vmatprep.subr.mxu0 0.0
    %1335 = vmatpush1.msra.mxu0 0.0
    %1336 = vmatprep.subr.mxu0 0.0
    %1337 = vmatpush1.msra.mxu0 0.0
    %1338 = vmatprep.subr.mxu0 0.0
    %1339 = vmatpush1.msra.mxu0 0.0
    %1340 = vmatprep.subr.mxu0 0.0
    %1341 = vmatpush1.msra.mxu0 0.0
    %1342 = vmatprep.subr.mxu0 0.0
    %1343 = vmatpush1.msra.mxu0 0.0
    %1344 = vmatprep.subr.mxu0 0.0
    %1345 = vmatpush1.msra.mxu0 0.0
    %1346 = vmatprep.subr.mxu0 0.0
    %1347 = vmatpush1.msra.mxu0 0.0
    %1348 = vmatprep.subr.mxu0 0.0
    %1349 = vmatpush1.msra.mxu0 0.0
    %1350 = vmatprep.subr.mxu0 0.0
    %1351 = vmatpush1.msra.mxu0 0.0
    %1352 = vmatprep.subr.mxu0 0.0
    %1353 = vmatpush1.msra.mxu0 0.0
    %1354 = vmatprep.subr.mxu0 0.0
    %1355 = vmatpush1.msra.mxu0 0.0
    %1356 = vmatprep.subr.mxu0 0.0
    %1357 = vmatpush1.msra.mxu0 0.0
    %1358 = vmatprep.subr.mxu0 0.0
    %1359 = vmatpush1.msra.mxu0 0.0
    %1360 = vmatprep.subr.mxu0 0.0
    %1361 = vmatpush1.msra.mxu0 0.0
    %1362 = vmatprep.subr.mxu0 0.0
    %1363 = vmatpush1.msra.mxu0 0.0
    %1364 = vmatprep.subr.mxu0 0.0
    %1365 = vmatpush1.msra.mxu0 0.0
    %1366 = vmatprep.subr.mxu0 0.0
    %1367 = vmatpush1.msra.mxu0 0.0
    %1368 = vmatprep.subr.mxu0 0.0
    %1369 = vmatpush1.msra.mxu0 0.0
    %1370 = vmatprep.subr.mxu0 0.0
    %1371 = vmatpush1.msra.mxu0 0.0
    %1372 = vmatprep.subr.mxu0 0.0
    %1373 = vmatpush1.msra.mxu0 0.0
    %1374 = vmatprep.subr.mxu0 0.0
    %1375 = vmatpush1.msra.mxu0 0.0
    %1376 = vmatprep.subr.mxu0 0.0
    %1377 = vmatpush1.msra.mxu0 0.0
    %1378 = vmatprep.subr.mxu0 0.0
    %1379 = vmatpush1.msra.mxu0 0.0
    %1380 = vmatprep.subr.mxu0 0.0
    %1381 = vmatpush1.msra.mxu0 0.0
    %1382 = vmatprep.mubr.f32.mxu0 0.0
    %1383 = vmatmul.mubr.f32.gmra.mrb[0].mxu0 %v1314
    %v1384 = vpop.f32.mrb[0].mxu0
    %v1385 = vadd.f32 0.0, %v1384
    %v1386 = vpop.f32.mrb[0].mxu0
    %1387 = vmatprep.mubr.f32.mxu0 0.0
    %1388 = vmatmul.mubr.f32.gmra.mrb[0].mxu0 %v1316
    %v1389 = vpop.f32.mrb[0].mxu0
    %v1390 = vadd.f32 0.0, %v1389
    %v1391 = vpop.f32.mrb[0].mxu0
    %1392 = vdwg.mxu0
    %v1393 = vadd.f32 %v1308, %v1385
    %v1394 = vadd.f32 %v1309, %v1390
    %vm1395 = vcmask 1043456
    %v1396 = vrot.slane %v26, 4
    %v1397 = vrot.slane %v27, 4
    %v1398 = vsel %vm1395, %v1396, %v1397
    %v1399 = vrot.slane %v28, 4
    %v1400 = vsel %vm1395, %v1397, %v1399
    %v1401 = vsel %vm52, %v1398, 0
    %v1403 = vsel %vm52, %v1400, 0
    %1405 = vmatprep.subr.mxu0 0.0
    %1406 = vmatpush1.msra.mxu0 %v591
    %1407 = vmatprep.subr.mxu0 0.0
    %1408 = vmatpush1.msra.mxu0 %v592
    %1409 = vmatprep.subr.mxu0 0.0
    %1410 = vmatpush1.msra.mxu0 %v593
    %1411 = vmatprep.subr.mxu0 0.0
    %1412 = vmatpush1.msra.mxu0 %v594
    %1413 = vmatprep.subr.mxu0 0.0
    %1414 = vmatpush1.msra.mxu0 %v595
    %1415 = vmatprep.subr.mxu0 0.0
    %1416 = vmatpush1.msra.mxu0 %v596
    %1417 = vmatprep.subr.mxu0 0.0
    %1418 = vmatpush1.msra.mxu0 %v597
    %1419 = vmatprep.subr.mxu0 0.0
    %1420 = vmatpush1.msra.mxu0 %v598
    %1421 = vmatprep.subr.mxu0 0.0
    %1422 = vmatpush1.msra.mxu0 0.0
    %1423 = vmatprep.subr.mxu0 0.0
    %1424 = vmatpush1.msra.mxu0 0.0
    %1425 = vmatprep.subr.mxu0 0.0
    %1426 = vmatpush1.msra.mxu0 0.0
    %1427 = vmatprep.subr.mxu0 0.0
    %1428 = vmatpush1.msra.mxu0 0.0
    %1429 = vmatprep.subr.mxu0 0.0
    %1430 = vmatpush1.msra.mxu0 0.0
    %1431 = vmatprep.subr.mxu0 0.0
    %1432 = vmatpush1.msra.mxu0 0.0
    %1433 = vmatprep.subr.mxu0 0.0
    %1434 = vmatpush1.msra.mxu0 0.0
    %1435 = vmatprep.subr.mxu0 0.0
    %1436 = vmatpush1.msra.mxu0 0.0
    %1437 = vmatprep.subr.mxu0 0.0
    %1438 = vmatpush1.msra.mxu0 0.0
    %1439 = vmatprep.subr.mxu0 0.0
    %1440 = vmatpush1.msra.mxu0 0.0
    %1441 = vmatprep.subr.mxu0 0.0
    %1442 = vmatpush1.msra.mxu0 0.0
    %1443 = vmatprep.subr.mxu0 0.0
    %1444 = vmatpush1.msra.mxu0 0.0
    %1445 = vmatprep.subr.mxu0 0.0
    %1446 = vmatpush1.msra.mxu0 0.0
    %1447 = vmatprep.subr.mxu0 0.0
    %1448 = vmatpush1.msra.mxu0 0.0
    %1449 = vmatprep.subr.mxu0 0.0
    %1450 = vmatpush1.msra.mxu0 0.0
    %1451 = vmatprep.subr.mxu0 0.0
    %1452 = vmatpush1.msra.mxu0 0.0
    %1453 = vmatprep.subr.mxu0 0.0
    %1454 = vmatpush1.msra.mxu0 0.0
    %1455 = vmatprep.subr.mxu0 0.0
    %1456 = vmatpush1.msra.mxu0 0.0
    %1457 = vmatprep.subr.mxu0 0.0
    %1458 = vmatpush1.msra.mxu0 0.0
    %1459 = vmatprep.subr.mxu0 0.0
    %1460 = vmatpush1.msra.mxu0 0.0
    %1461 = vmatprep.subr.mxu0 0.0
    %1462 = vmatpush1.msra.mxu0 0.0
    %1463 = vmatprep.subr.mxu0 0.0
    %1464 = vmatpush1.msra.mxu0 0.0
    %1465 = vmatprep.subr.mxu0 0.0
    %1466 = vmatpush1.msra.mxu0 0.0
    %1467 = vmatprep.subr.mxu0 0.0
    %1468 = vmatpush1.msra.mxu0 0.0
    %1469 = vmatprep.mubr.f32.mxu0 0.0
    %1470 = vmatmul.mubr.f32.gmra.mrb[0].mxu0 %v1401
    %v1471 = vpop.f32.mrb[0].mxu0
    %v1472 = vadd.f32 0.0, %v1471
    %v1473 = vpop.f32.mrb[0].mxu0
    %1474 = vmatprep.mubr.f32.mxu0 0.0
    %1475 = vmatmul.mubr.f32.gmra.mrb[0].mxu0 %v1403
    %v1476 = vpop.f32.mrb[0].mxu0
    %v1477 = vadd.f32 0.0, %v1476
    %v1478 = vpop.f32.mrb[0].mxu0
    %1479 = vdwg.mxu0
    %v1480 = vadd.f32 %v1393, %v1472
    %v1481 = vadd.f32 %v1394, %v1477
    %1482 = vrot.lane.b32.xlu0 %v1398, 124
    %v1483 = vpop.permute.xlu0 %1482
    %1484 = vrot.lane.b32.xlu0 %v1400, 124
    %v1485 = vpop.permute.xlu0 %1484
    %v1486 = vsel %vm52, %v1483, 0
    %v1488 = vsel %vm52, %v1485, 0
    %1490 = vmatprep.subr.mxu0 0.0
    %1491 = vmatpush1.msra.mxu0 %v687
    %1492 = vmatprep.subr.mxu0 0.0
    %1493 = vmatpush1.msra.mxu0 %v688
    %1494 = vmatprep.subr.mxu0 0.0
    %1495 = vmatpush1.msra.mxu0 %v689
    %1496 = vmatprep.subr.mxu0 0.0
    %1497 = vmatpush1.msra.mxu0 %v690
    %1498 = vmatprep.subr.mxu0 0.0
    %1499 = vmatpush1.msra.mxu0 %v691
    %1500 = vmatprep.subr.mxu0 0.0
    %1501 = vmatpush1.msra.mxu0 %v692
    %1502 = vmatprep.subr.mxu0 0.0
    %1503 = vmatpush1.msra.mxu0 %v693
    %1504 = vmatprep.subr.mxu0 0.0
    %1505 = vmatpush1.msra.mxu0 %v694
    %1506 = vmatprep.subr.mxu0 0.0
    %1507 = vmatpush1.msra.mxu0 0.0
    %1508 = vmatprep.subr.mxu0 0.0
    %1509 = vmatpush1.msra.mxu0 0.0
    %1510 = vmatprep.subr.mxu0 0.0
    %1511 = vmatpush1.msra.mxu0 0.0
    %1512 = vmatprep.subr.mxu0 0.0
    %1513 = vmatpush1.msra.mxu0 0.0
    %1514 = vmatprep.subr.mxu0 0.0
    %1515 = vmatpush1.msra.mxu0 0.0
    %1516 = vmatprep.subr.mxu0 0.0
    %1517 = vmatpush1.msra.mxu0 0.0
    %1518 = vmatprep.subr.mxu0 0.0
    %1519 = vmatpush1.msra.mxu0 0.0
    %1520 = vmatprep.subr.mxu0 0.0
    %1521 = vmatpush1.msra.mxu0 0.0
    %1522 = vmatprep.subr.mxu0 0.0
    %1523 = vmatpush1.msra.mxu0 0.0
    %1524 = vmatprep.subr.mxu0 0.0
    %1525 = vmatpush1.msra.mxu0 0.0
    %1526 = vmatprep.subr.mxu0 0.0
    %1527 = vmatpush1.msra.mxu0 0.0
    %1528 = vmatprep.subr.mxu0 0.0
    %1529 = vmatpush1.msra.mxu0 0.0
    %1530 = vmatprep.subr.mxu0 0.0
    %1531 = vmatpush1.msra.mxu0 0.0
    %1532 = vmatprep.subr.mxu0 0.0
    %1533 = vmatpush1.msra.mxu0 0.0
    %1534 = vmatprep.subr.mxu0 0.0
    %1535 = vmatpush1.msra.mxu0 0.0
    %1536 = vmatprep.subr.mxu0 0.0
    %1537 = vmatpush1.msra.mxu0 0.0
    %1538 = vmatprep.subr.mxu0 0.0
    %1539 = vmatpush1.msra.mxu0 0.0
    %1540 = vmatprep.subr.mxu0 0.0
    %1541 = vmatpush1.msra.mxu0 0.0
    %1542 = vmatprep.subr.mxu0 0.0
    %1543 = vmatpush1.msra.mxu0 0.0
    %1544 = vmatprep.subr.mxu0 0.0
    %1545 = vmatpush1.msra.mxu0 0.0
    %1546 = vmatprep.subr.mxu0 0.0
    %1547 = vmatpush1.msra.mxu0 0.0
    %1548 = vmatprep.subr.mxu0 0.0
    %1549 = vmatpush1.msra.mxu0 0.0
    %1550 = vmatprep.subr.mxu0 0.0
    %1551 = vmatpush1.msra.mxu0 0.0
    %1552 = vmatprep.subr.mxu0 0.0
    %1553 = vmatpush1.msra.mxu0 0.0
    %1554 = vmatprep.mubr.f32.mxu0 0.0
    %1555 = vmatmul.mubr.f32.gmra.mrb[0].mxu0 %v1486
    %v1556 = vpop.f32.mrb[0].mxu0
    %v1557 = vadd.f32 0.0, %v1556
    %v1558 = vpop.f32.mrb[0].mxu0
    %1559 = vmatprep.mubr.f32.mxu0 0.0
    %1560 = vmatmul.mubr.f32.gmra.mrb[0].mxu0 %v1488
    %v1561 = vpop.f32.mrb[0].mxu0
    %v1562 = vadd.f32 0.0, %v1561
    %v1563 = vpop.f32.mrb[0].mxu0
    %1564 = vdwg.mxu0
    %v1565 = vadd.f32 %v1480, %v1557
    %v1566 = vadd.f32 %v1481, %v1562
    %1567 = vrot.lane.b32.xlu0 %v1398, 120
    %v1568 = vpop.permute.xlu0 %1567
    %1569 = vrot.lane.b32.xlu0 %v1400, 120
    %v1570 = vpop.permute.xlu0 %1569
    %v1571 = vsel %vm52, %v1568, 0
    %v1573 = vsel %vm52, %v1570, 0
    %1575 = vmatprep.subr.mxu0 0.0
    %1576 = vmatpush1.msra.mxu0 %v781
    %1577 = vmatprep.subr.mxu0 0.0
    %1578 = vmatpush1.msra.mxu0 %v782
    %1579 = vmatprep.subr.mxu0 0.0
    %1580 = vmatpush1.msra.mxu0 %v783
    %1581 = vmatprep.subr.mxu0 0.0
    %1582 = vmatpush1.msra.mxu0 %v784
    %1583 = vmatprep.subr.mxu0 0.0
    %1584 = vmatpush1.msra.mxu0 %v785
    %1585 = vmatprep.subr.mxu0 0.0
    %1586 = vmatpush1.msra.mxu0 %v786
    %1587 = vmatprep.subr.mxu0 0.0
    %1588 = vmatpush1.msra.mxu0 %v787
    %1589 = vmatprep.subr.mxu0 0.0
    %1590 = vmatpush1.msra.mxu0 %v788
    %1591 = vmatprep.subr.mxu0 0.0
    %1592 = vmatpush1.msra.mxu0 0.0
    %1593 = vmatprep.subr.mxu0 0.0
    %1594 = vmatpush1.msra.mxu0 0.0
    %1595 = vmatprep.subr.mxu0 0.0
    %1596 = vmatpush1.msra.mxu0 0.0
    %1597 = vmatprep.subr.mxu0 0.0
    %1598 = vmatpush1.msra.mxu0 0.0
    %1599 = vmatprep.subr.mxu0 0.0
    %1600 = vmatpush1.msra.mxu0 0.0
    %1601 = vmatprep.subr.mxu0 0.0
    %1602 = vmatpush1.msra.mxu0 0.0
    %1603 = vmatprep.subr.mxu0 0.0
    %1604 = vmatpush1.msra.mxu0 0.0
    %1605 = vmatprep.subr.mxu0 0.0
    %1606 = vmatpush1.msra.mxu0 0.0
    %1607 = vmatprep.subr.mxu0 0.0
    %1608 = vmatpush1.msra.mxu0 0.0
    %1609 = vmatprep.subr.mxu0 0.0
    %1610 = vmatpush1.msra.mxu0 0.0
    %1611 = vmatprep.subr.mxu0 0.0
    %1612 = vmatpush1.msra.mxu0 0.0
    %1613 = vmatprep.subr.mxu0 0.0
    %1614 = vmatpush1.msra.mxu0 0.0
    %1615 = vmatprep.subr.mxu0 0.0
    %1616 = vmatpush1.msra.mxu0 0.0
    %1617 = vmatprep.subr.mxu0 0.0
    %1618 = vmatpush1.msra.mxu0 0.0
    %1619 = vmatprep.subr.mxu0 0.0
    %1620 = vmatpush1.msra.mxu0 0.0
    %1621 = vmatprep.subr.mxu0 0.0
    %1622 = vmatpush1.msra.mxu0 0.0
    %1623 = vmatprep.subr.mxu0 0.0
    %1624 = vmatpush1.msra.mxu0 0.0
    %1625 = vmatprep.subr.mxu0 0.0
    %1626 = vmatpush1.msra.mxu0 0.0
    %1627 = vmatprep.subr.mxu0 0.0
    %1628 = vmatpush1.msra.mxu0 0.0
    %1629 = vmatprep.subr.mxu0 0.0
    %1630 = vmatpush1.msra.mxu0 0.0
    %1631 = vmatprep.subr.mxu0 0.0
    %1632 = vmatpush1.msra.mxu0 0.0
    %1633 = vmatprep.subr.mxu0 0.0
    %1634 = vmatpush1.msra.mxu0 0.0
    %1635 = vmatprep.subr.mxu0 0.0
    %1636 = vmatpush1.msra.mxu0 0.0
    %1637 = vmatprep.subr.mxu0 0.0
    %1638 = vmatpush1.msra.mxu0 0.0
    %1639 = vmatprep.mubr.f32.mxu0 0.0
    %1640 = vmatmul.mubr.f32.gmra.mrb[0].mxu0 %v1571
    %v1641 = vpop.f32.mrb[0].mxu0
    %v1642 = vadd.f32 0.0, %v1641
    %v1643 = vpop.f32.mrb[0].mxu0
    %1644 = vmatprep.mubr.f32.mxu0 0.0
    %1645 = vmatmul.mubr.f32.gmra.mrb[0].mxu0 %v1573
    %v1646 = vpop.f32.mrb[0].mxu0
    %v1647 = vadd.f32 0.0, %v1646
    %v1648 = vpop.f32.mrb[0].mxu0
    %1649 = vdwg.mxu0
    %v1650 = vadd.f32 %v1565, %v1642
    %v1651 = vadd.f32 %v1566, %v1647
    %v1652 = vadd.f32 %v1650, %v879
    %v1653 = vadd.f32 %v1651, %v879
    %v1654 = vmax.f32 %v1652, 0.0
    %v1655 = vmax.f32 %v1653, 0.0
    %v1656 = vld [vmem:[%s3] sm:$0x3]
    %vm1657 = vcmask 261120
    %v1659 = vsel %vm1657, %v1656, 0
    %1661 = vmatprep.subr.mxu0 0.0
    %1662 = vmatpush1.msra.mxu0 %v883
    %1663 = vmatprep.subr.mxu0 0.0
    %1664 = vmatpush1.msra.mxu0 %v884
    %1665 = vmatprep.subr.mxu0 0.0
    %1666 = vmatpush1.msra.mxu0 %v1654
    %1667 = vmatprep.subr.mxu0 0.0
    %1668 = vmatpush1.msra.mxu0 %v1655
    %1669 = vmatprep.subr.mxu0 0.0
    %1670 = vmatpush1.msra.mxu0 0.0
    %1671 = vmatprep.subr.mxu0 0.0
    %1672 = vmatpush1.msra.mxu0 0.0
    %1673 = vmatprep.subr.mxu0 0.0
    %1674 = vmatpush1.msra.mxu0 0.0
    %1675 = vmatprep.subr.mxu0 0.0
    %1676 = vmatpush1.msra.mxu0 0.0
    %1677 = vmatprep.subr.mxu0 0.0
    %1678 = vmatpush1.msra.mxu0 0.0
    %1679 = vmatprep.subr.mxu0 0.0
    %1680 = vmatpush1.msra.mxu0 0.0
    %1681 = vmatprep.subr.mxu0 0.0
    %1682 = vmatpush1.msra.mxu0 0.0
    %1683 = vmatprep.subr.mxu0 0.0
    %1684 = vmatpush1.msra.mxu0 0.0
    %1685 = vmatprep.subr.mxu0 0.0
    %1686 = vmatpush1.msra.mxu0 0.0
    %1687 = vmatprep.subr.mxu0 0.0
    %1688 = vmatpush1.msra.mxu0 0.0
    %1689 = vmatprep.subr.mxu0 0.0
    %1690 = vmatpush1.msra.mxu0 0.0
    %1691 = vmatprep.subr.mxu0 0.0
    %1692 = vmatpush1.msra.mxu0 0.0
    %1693 = vmatprep.subr.mxu0 0.0
    %1694 = vmatpush1.msra.mxu0 0.0
    %1695 = vmatprep.subr.mxu0 0.0
    %1696 = vmatpush1.msra.mxu0 0.0
    %1697 = vmatprep.subr.mxu0 0.0
    %1698 = vmatpush1.msra.mxu0 0.0
    %1699 = vmatprep.subr.mxu0 0.0
    %1700 = vmatpush1.msra.mxu0 0.0
    %1701 = vmatprep.subr.mxu0 0.0
    %1702 = vmatpush1.msra.mxu0 0.0
    %1703 = vmatprep.subr.mxu0 0.0
    %1704 = vmatpush1.msra.mxu0 0.0
    %1705 = vmatprep.subr.mxu0 0.0
    %1706 = vmatpush1.msra.mxu0 0.0
    %1707 = vmatprep.subr.mxu0 0.0
    %1708 = vmatpush1.msra.mxu0 0.0
    %1709 = vmatprep.subr.mxu0 0.0
    %1710 = vmatpush1.msra.mxu0 0.0
    %1711 = vmatprep.subr.mxu0 0.0
    %1712 = vmatpush1.msra.mxu0 0.0
    %1713 = vmatprep.subr.mxu0 0.0
    %1714 = vmatpush1.msra.mxu0 0.0
    %1715 = vmatprep.subr.mxu0 0.0
    %1716 = vmatpush1.msra.mxu0 0.0
    %1717 = vmatprep.subr.mxu0 0.0
    %1718 = vmatpush1.msra.mxu0 0.0
    %1719 = vmatprep.subr.mxu0 0.0
    %1720 = vmatpush1.msra.mxu0 0.0
    %1721 = vmatprep.subr.mxu0 0.0
    %1722 = vmatpush1.msra.mxu0 0.0
    %1723 = vmatprep.subr.mxu0 0.0
    %1724 = vmatpush1.msra.mxu0 0.0
    %1725 = vmatprep.mubr.f32.mxu0 0.0
    %1726 = vmatmul.mubr.f32.gmra.mrb[0].mxu0 %v1659
    %v1727 = vpop.f32.mrb[0].mxu0
    %v1728 = vadd.f32 0.0, %v1727
    %v1729 = vpop.f32.mrb[0].mxu0
    %1730 = vdwg.mxu0
    %v1731 = vld [vmem:[%s4] sm:$0xff]
    %v1732 = vld [vmem:[%s4 + $0x8] sm:$0xff]
    %v1733 = vld [vmem:[%s4 + $0x10] sm:$0xff]
    %v1734 = vld [vmem:[%s4 + $0x18] sm:$0xff]
    %v1735 = vld [vmem:[%s4 + $0x20] sm:$0xff]
    %v1736 = vld [vmem:[%s4 + $0x28] sm:$0xff]
    %v1737 = vld [vmem:[%s4 + $0x30] sm:$0xff]
    %v1738 = vld [vmem:[%s4 + $0x38] sm:$0xff]
    %v1739 = vld [vmem:[%s4 + $0x40] sm:$0xff]
    %v1740 = vld [vmem:[%s4 + $0x48] sm:$0xff]
    %v1741 = vld [vmem:[%s4 + $0x50] sm:$0xff]
    %v1742 = vld [vmem:[%s4 + $0x58] sm:$0xff]
    %v1743 = vld [vmem:[%s4 + $0x60] sm:$0xff]
    %v1744 = vld [vmem:[%s4 + $0x68] sm:$0xff]
    %v1745 = vld [vmem:[%s4 + $0x70] sm:$0xff]
    %v1746 = vld [vmem:[%s4 + $0x78] sm:$0xff]
    %v1747 = vld [vmem:[%s5] sm:$0x1]
    %v1749 = vlaneseq
    %v1750 = vshrl.u32 %v1749, 7
    %v1751 = vsub.s32 0, %v1750
    %v1752 = vrot.slane %v1747, %v1751
    %1754 = vmatprep.subr.mxu0 0.0
    %1755 = vmatpush1.msra.mxu0 %v1731
    %1756 = vmatprep.subr.mxu0 0.0
    %1757 = vmatpush1.msra.mxu0 %v1732
    %1758 = vmatprep.subr.mxu0 0.0
    %1759 = vmatpush1.msra.mxu0 %v1733
    %1760 = vmatprep.subr.mxu0 0.0
    %1761 = vmatpush1.msra.mxu0 %v1734
    %1762 = vmatprep.subr.mxu0 0.0
    %1763 = vmatpush1.msra.mxu0 %v1735
    %1764 = vmatprep.subr.mxu0 0.0
    %1765 = vmatpush1.msra.mxu0 %v1736
    %1766 = vmatprep.subr.mxu0 0.0
    %1767 = vmatpush1.msra.mxu0 %v1737
    %1768 = vmatprep.subr.mxu0 0.0
    %1769 = vmatpush1.msra.mxu0 %v1738
    %1770 = vmatprep.subr.mxu0 0.0
    %1771 = vmatpush1.msra.mxu0 %v1739
    %1772 = vmatprep.subr.mxu0 0.0
    %1773 = vmatpush1.msra.mxu0 %v1740
    %1774 = vmatprep.subr.mxu0 0.0
    %1775 = vmatpush1.msra.mxu0 %v1741
    %1776 = vmatprep.subr.mxu0 0.0
    %1777 = vmatpush1.msra.mxu0 %v1742
    %1778 = vmatprep.subr.mxu0 0.0
    %1779 = vmatpush1.msra.mxu0 %v1743
    %1780 = vmatprep.subr.mxu0 0.0
    %1781 = vmatpush1.msra.mxu0 %v1744
    %1782 = vmatprep.subr.mxu0 0.0
    %1783 = vmatpush1.msra.mxu0 %v1745
    %1784 = vmatprep.subr.mxu0 0.0
    %1785 = vmatpush1.msra.mxu0 %v1746
    %1786 = vmatprep.subr.mxu0 0.0
    %1787 = vmatpush1.msra.mxu0 0.0
    %1788 = vmatprep.subr.mxu0 0.0
    %1789 = vmatpush1.msra.mxu0 0.0
    %1790 = vmatprep.subr.mxu0 0.0
    %1791 = vmatpush1.msra.mxu0 0.0
    %1792 = vmatprep.subr.mxu0 0.0
    %1793 = vmatpush1.msra.mxu0 0.0
    %1794 = vmatprep.subr.mxu0 0.0
    %1795 = vmatpush1.msra.mxu0 0.0
    %1796 = vmatprep.subr.mxu0 0.0
    %1797 = vmatpush1.msra.mxu0 0.0
    %1798 = vmatprep.subr.mxu0 0.0
    %1799 = vmatpush1.msra.mxu0 0.0
    %1800 = vmatprep.subr.mxu0 0.0
    %1801 = vmatpush1.msra.mxu0 0.0
    %1802 = vmatprep.subr.mxu0 0.0
    %1803 = vmatpush1.msra.mxu0 0.0
    %1804 = vmatprep.subr.mxu0 0.0
    %1805 = vmatpush1.msra.mxu0 0.0
    %1806 = vmatprep.subr.mxu0 0.0
    %1807 = vmatpush1.msra.mxu0 0.0
    %1808 = vmatprep.subr.mxu0 0.0
    %1809 = vmatpush1.msra.mxu0 0.0
    %1810 = vmatprep.subr.mxu0 0.0
    %1811 = vmatpush1.msra.mxu0 0.0
    %1812 = vmatprep.subr.mxu0 0.0
    %1813 = vmatpush1.msra.mxu0 0.0
    %1814 = vmatprep.subr.mxu0 0.0
    %1815 = vmatpush1.msra.mxu0 0.0
    %1816 = vmatprep.subr.mxu0 0.0
    %1817 = vmatpush1.msra.mxu0 0.0
    %1818 = vmatprep.mubr.f32.mxu0 0.0
    %1819 = vmatmul.mubr.f32.gmra.mrb[0].mxu0 %v1728
    %v1820 = vpop.f32.mrb[0].mxu0
    %v1821 = vadd.f32 %v1752, %v1820
    %v1822 = vpop.f32.mrb[0].mxu0
    %1823 = vdwg.mxu0
    %1824 = vst [vmem:[#allocation2] sm:$0x3] %v1821
    // Predicated region
    $region26: #{joint_model_forward.1} parent=1 // pred_check
      _
    $region27: #{joint_model_forward.1} parent=1 // pred_check_branch
      %1826 = sbr.rel (0) target = $region29
    $region28: #{joint_model_forward.1} parent=1 // pred_region
      %s1828 = ssub.s32 32, 32
      %1829 = vsyncadd [#allocation3], %s1828
      %s1831 = sshll.u32 [#allocation2], 4
      %s1832 = int_to_ptr.vmem [resolvable:$true] %s1831
      %1834 = dma.vmem_to_hbm [thread:$0]  %s1832, 32, %s6, [#allocation3]
    $region29: #{joint_model_forward.1} parent=1 // pred_fallthru
      _
    // Predicated region
    $region30: #{joint_model_forward.1} parent=1 // pred_check
      _
    $region31: #{joint_model_forward.1} parent=1 // pred_check_branch
      %1836 = sbr.rel (0) target = $region33
    $region32: #{joint_model_forward.1} parent=1 // pred_region
      %1837 = dma.done [#allocation3], 32
    $region33: #{joint_model_forward.1} parent=1 // pred_fallthru
      _
    %1838 = vsyncpa [#allocation3], 1

</llo_original>
